<compile_context>
chip_gen: v7x
topology: tpu7x:2x2x1
jax: 0.10.0
libtpu: 0.0.40
codegen_flags: <defaults>
</compile_context>

<pallas_src>
import functools

import jax
import jax.numpy as jnp
from jax.experimental import pallas as pl
from jax.experimental.pallas import tpu as pltpu


def _expert_mlp_kernel(x_ref, w1_ref, a1_ref, b1_ref, w2a2_ref, b2_ref,
                       o_ref, acc_ref, t1_ref, *, scale, rank, rp, h_dim):
    """Grid point = (expert e, token tile m, ffn tile f).  Leading block dim is 1."""
    f = pl.program_id(2)
    x = x_ref[0]                                     # (tm, H) bf16, resident across f

    @pl.when(f == 0)
    def _init():
        acc_ref[...] = jnp.zeros_like(acc_ref)
        # LoRA-A1 projection is F-invariant: compute once per (expert, token tile),
        # apply the LoRA scale on the tiny (tm, r) result, cache in VMEM.
        t1 = jnp.dot(x, a1_ref[0], preferred_element_type=jnp.float32)
        t1_ref[...] = (scale * t1).astype(t1_ref.dtype)

    # ---- first GEMM tile + LoRA delta -> h tile (tm, tn), f32 ----
    h = jnp.dot(x, w1_ref[0], preferred_element_type=jnp.float32)
    h = h + jnp.dot(t1_ref[...], b1_ref[0], preferred_element_type=jnp.float32)
    # megablocks default activation: F.gelu(approximate="tanh"), kept in f32.
    h = jax.nn.gelu(h, approximate=True)
    h = h.astype(x.dtype)                            # bf16 operand for 2nd GEMM

    # ---- second GEMM, fused [A2 | W2]: a single lane-dense MXU call per step
    #      accumulates both the rank-r LoRA projection (lanes [0, rp)) and the
    #      base output (lanes [rp, rp+H)) into one resident f32 accumulator. ----
    acc_ref[...] += jnp.dot(h, w2a2_ref[0], preferred_element_type=jnp.float32)

    @pl.when(f == pl.num_programs(2) - 1)
    def _finalize():
        acc = acc_ref[...]
        t2 = (scale * acc[:, :rank]).astype(x.dtype)               # (tm, r), cheap
        y = acc[:, rp:rp + h_dim] + jnp.dot(t2, b2_ref[0],
                                            preferred_element_type=jnp.float32)
        o_ref[0] = y.astype(o_ref.dtype)


def _round_up(v, m):
    return -(-v // m) * m


def _vmem_budget_bytes():
    """Generation-aware VMEM spending budget (bytes) for the kernel working set."""
    cap = 64 * 1024 * 1024                     # conservative default (v7x-class)
    try:
        cap = int(pltpu.get_tpu_info().vmem_capacity_bytes)
    except Exception:
        pass
    if cap <= 64 * 1024 * 1024:                # v7x: 64 MiB/TC -> ~52 MiB budget
        budget = int(cap * 0.82)
    else:                                       # v5e / v6e: 128 MiB -> ~108 MiB
        budget = min(cap - 18 * 1024 * 1024, 110 * 1024 * 1024)
    return cap, budget


def _tile_candidates(dim, align, cap):
    """Multiples of `align` dividing `dim`, <= cap, descending (dim is align-padded)."""
    cands = [t for t in range(align, dim + 1, align) if dim % t == 0 and t <= cap]
    if not cands:
        cands = [min(align, dim)]
    return sorted(set(cands), reverse=True)


def parallel_dropless_mlp(x, w1, a1, b1, w2, a2, b2, *, lora_alpha, lora_r,
                          tm_cap=None, tn_cap=None):
    """x: (E, C, H) tokens grouped per expert.  Returns (E, C, H).

    w1: (E, H, F)  w2: (E, F, H)  a1: (E, H, r)  b1: (E, r, F)
    a2: (E, F, r)  b2: (E, r, H)   (A stored transposed, as in the module).
    """
    E, C, H = x.shape
    F = w1.shape[-1]
    r = a1.shape[-1]
    scale = float(lora_alpha) / float(lora_r)
    dt = x.dtype
    bpe = jnp.dtype(dt).itemsize

    # --- pad token / ffn dims to 128-aligned sizes (MXU-dense tiles; zero rows
    #     and columns contribute exactly zero, output rows are sliced off). ---
    C_pad = _round_up(C, 128)
    F_pad = _round_up(F, 128)
    rp = _round_up(max(r, 1), 128)        # lane-padded LoRA slot in the fused acc

    if C_pad != C:
        x = jnp.pad(x, ((0, 0), (0, C_pad - C), (0, 0)))
    if F_pad != F:
        w1 = jnp.pad(w1, ((0, 0), (0, 0), (0, F_pad - F)))
        b1 = jnp.pad(b1, ((0, 0), (0, 0), (0, F_pad - F)))
        w2 = jnp.pad(w2, ((0, 0), (0, F_pad - F), (0, 0)))
        a2 = jnp.pad(a2, ((0, 0), (0, F_pad - F), (0, 0)))
    # Fuse the rank-r A2 projection into the W2 GEMM along N (A2 lane-padded
    # first so the y slice at finalize starts at the aligned offset rp).
    a2p = jnp.pad(a2, ((0, 0), (0, 0), (0, rp - r)))
    w2a2 = jnp.concatenate([a2p, w2], axis=-1)              # (E, F_pad, rp + H)

    cap, budget = _vmem_budget_bytes()

    def footprint(tm, tn):
        blocks = (tm * H                 # x block
                  + tm * H               # out block
                  + H * tn               # w1 tile
                  + H * 128              # a1 (lane-padded in VMEM)
                  + 16 * tn              # b1 tile (sublane-padded)
                  + tn * (rp + H)        # fused [A2|W2] tile
                  + 16 * H)              # b2
        scratch = 4 * tm * (rp + H) + bpe * tm * 128
        return 2 * bpe * blocks + scratch + (2 << 20)       # 2x double-buffer + slack

    # Maximize the token tile FIRST: HBM weight traffic scales with C_pad/tm
    # (ideally tm == C_pad -> weights streamed exactly once per expert); tn only
    # amortizes per-step overhead, so it is grown second / shrunk first.
    tm_list = _tile_candidates(C_pad, 128, tm_cap or C_pad)
    tn_list = _tile_candidates(F_pad, 128, tn_cap or F_pad)
    tm = next((t for t in tm_list if footprint(t, tn_list[-1]) <= budget), tm_list[-1])
    tn = next((t for t in tn_list if footprint(tm, t) <= budget), tn_list[-1])
    n_m, n_f = C_pad // tm, F_pad // tn

    kernel = functools.partial(_expert_mlp_kernel, scale=scale, rank=r, rp=rp, h_dim=H)

    in_specs = [
        pl.BlockSpec((1, tm, H), lambda e, m, f: (e, m, 0)),        # x (resident over f)
        pl.BlockSpec((1, H, tn), lambda e, m, f: (e, 0, f)),        # w1 tile
        pl.BlockSpec((1, H, r), lambda e, m, f: (e, 0, 0)),         # A1 (per expert)
        pl.BlockSpec((1, r, tn), lambda e, m, f: (e, 0, f)),        # B1 tile
        pl.BlockSpec((1, tn, rp + H), lambda e, m, f: (e, f, 0)),   # fused [A2|W2] tile
        pl.BlockSpec((1, r, H), lambda e, m, f: (e, 0, 0)),         # B2 (per expert)
    ]
    out_specs = pl.BlockSpec((1, tm, H), lambda e, m, f: (e, m, 0))
    scratch_shapes = [
        pltpu.VMEM((tm, rp + H), jnp.float32),   # fused [h@A2 | h@W2] accumulator
        pltpu.VMEM((tm, r), dt),                 # cached scale * (x @ A1)
    ]

    est = footprint(tm, tn)
    vmem_limit = int(min(cap - 2 * 1024 * 1024, max(budget, int(1.25 * est))))

    # Advisory cost for XLA scheduling of the surrounding MoE glue.  The
    # f-streamed weight slabs are re-read from HBM once per token tile (n_m).
    stream_bytes = (w1.size + b1.size + w2a2.size) * bpe
    resident_bytes = (a1.size + b2.size) * bpe
    io_bytes = 2 * E * C_pad * H * bpe
    flops = 2 * E * C_pad * (H * F_pad + F_pad * (rp + H) + H * r + r * F_pad + r * H)
    cost = pl.CostEstimate(
        flops=int(flops),
        transcendentals=int(E * C_pad * F_pad),
        bytes_accessed=int(n_m * stream_bytes + resident_bytes + io_bytes))

    out = pl.pallas_call(
        kernel,
        out_shape=jax.ShapeDtypeStruct((E, C_pad, H), dt),
        grid_spec=pltpu.PrefetchScalarGridSpec(
            num_scalar_prefetch=0,
            grid=(E, n_m, n_f),
            in_specs=in_specs,
            out_specs=out_specs,
            scratch_shapes=scratch_shapes),
        compiler_params=pltpu.CompilerParams(
            dimension_semantics=("parallel", "parallel", "arbitrary"),
            vmem_limit_bytes=vmem_limit),
        cost_estimate=cost,
    )(x, w1, a1, b1, w2a2, b2)

    return out[:, :C, :] if C_pad != C else out


def _reference(x, w1, a1, b1, w2, a2, b2, *, lora_alpha, lora_r):
    """Pure-JAX reference mirroring the kernel's dtype behavior (bf16 operands,
    f32 accumulation, bf16 h / LoRA intermediates)."""
    scale = float(lora_alpha) / float(lora_r)
    f32 = jnp.float32
    t1 = (scale * jnp.einsum("ech,ehr->ecr", x, a1,
                             preferred_element_type=f32)).astype(x.dtype)
    h = (jnp.einsum("ech,ehf->ecf", x, w1, preferred_element_type=f32)
         + jnp.einsum("ecr,erf->ecf", t1, b1, preferred_element_type=f32))
    h = jax.nn.gelu(h, approximate=True).astype(x.dtype)
    t2 = (scale * jnp.einsum("ecf,efr->ecr", h, a2,
                             preferred_element_type=f32)).astype(x.dtype)
    y = (jnp.einsum("ecf,efh->ech", h, w2, preferred_element_type=f32)
         + jnp.einsum("ecr,erh->ech", t2, b2, preferred_element_type=f32))
    return y.astype(x.dtype)


if __name__ == "__main__":
    # Small synthetic config consistent with the module:
    #   num_experts E, tokens/expert C, hidden_size H, ffn_hidden_size F,
    #   LoRA rank r, lora_alpha.  C=192 (not 128-aligned) exercises the wrapper
    #   padding; tile caps force grid (E, 2, 2) so the m tiling and the
    #   F-reduction accumulator path are actually exercised.
    E, C, H, F, r, alpha = 2, 192, 256, 512, 16, 32
    tm_cap, tn_cap = 128, 256

    key = jax.random.PRNGKey(0)
    ks = jax.random.split(key, 7)
    dt = jnp.bfloat16

    # Tokens already grouped per expert (routing/permutation is outside the MLP).
    x = (jax.random.normal(ks[0], (E, C, H), jnp.float32) * 0.5).astype(dt)

    # Base expert weights (megablocks mlp.w1 / mlp.w2, viewed per expert).
    w1 = (jax.random.normal(ks[1], (E, H, F), jnp.float32) * (1.0 / H) ** 0.5).astype(dt)
    w2 = (jax.random.normal(ks[2], (E, F, H), jnp.float32) * (1.0 / F) ** 0.5).astype(dt)

    # LoRA adapters (A stored transposed as in __init__: A.weight.data.T).
    # NOTE: real PEFT init sets B = 0; small nonzero values here so the LoRA
    # branch is numerically exercised.
    a1 = (jax.random.normal(ks[3], (E, H, r), jnp.float32) * (1.0 / H) ** 0.5).astype(dt)
    b1 = (jax.random.normal(ks[4], (E, r, F), jnp.float32) * 0.01).astype(dt)
    a2 = (jax.random.normal(ks[5], (E, F, r), jnp.float32) * (1.0 / F) ** 0.5).astype(dt)
    b2 = (jax.random.normal(ks[6], (E, r, H), jnp.float32) * 0.01).astype(dt)

    out = parallel_dropless_mlp(x, w1, a1, b1, w2, a2, b2,
                                lora_alpha=alpha, lora_r=r,
                                tm_cap=tm_cap, tn_cap=tn_cap)
    out = jax.block_until_ready(out)

    ref = jax.block_until_ready(
        _reference(x, w1, a1, b1, w2, a2, b2, lora_alpha=alpha, lora_r=r))

    assert out.shape == (E, C, H) and out.dtype == dt
    assert jnp.allclose(out.astype(jnp.float32), ref.astype(jnp.float32),
                        rtol=5e-2, atol=5e-2), "mismatch vs reference"
    print("KERNEL_OK")
</pallas_src>

<mosaic_0001>
module attributes {stable_mosaic.version = 11 : i64} {
  func.func @_expert_mlp_kernel(%arg0: i32, %arg1: i32, %arg2: i32, %arg3: memref<1x128x256xbf16, #tpu.memory_space<vmem>>, %arg4: memref<1x256x256xbf16, #tpu.memory_space<vmem>>, %arg5: memref<1x256x16xbf16, #tpu.memory_space<vmem>>, %arg6: memref<1x16x256xbf16, #tpu.memory_space<vmem>>, %arg7: memref<1x256x384xbf16, #tpu.memory_space<vmem>>, %arg8: memref<1x16x256xbf16, #tpu.memory_space<vmem>>, %arg9: memref<1x128x256xbf16, #tpu.memory_space<vmem>>, %arg10: memref<128x384xf32, #tpu.memory_space<vmem>>, %arg11: memref<128x16xbf16, #tpu.memory_space<vmem>>) attributes {dimension_semantics = [#tpu.dimension_semantics<parallel>, #tpu.dimension_semantics<parallel>, #tpu.dimension_semantics<arbitrary>], iteration_bounds = array<i64: 2, 2, 2>, scalar_prefetch = 0 : i64, scratch_operands = 2 : i64, tpu.core_type = #tpu.core_type<tc>, window_params = [{transform_indices = @transform_0, window_bounds = array<i64: 1, 128, 256>}, {transform_indices = @transform_1, window_bounds = array<i64: 1, 256, 256>}, {transform_indices = @transform_2, window_bounds = array<i64: 1, 256, 16>}, {transform_indices = @transform_3, window_bounds = array<i64: 1, 16, 256>}, {transform_indices = @transform_4, window_bounds = array<i64: 1, 256, 384>}, {transform_indices = @transform_5, window_bounds = array<i64: 1, 16, 256>}, {transform_indices = @transform_6, window_bounds = array<i64: 1, 128, 256>}]} {
    %c0 = arith.constant 0 : index
    %c0_0 = arith.constant 0 : index
    %c0_1 = arith.constant 0 : index
    %0 = vector.load %arg3[%c0, %c0_0, %c0_1] : memref<1x128x256xbf16, #tpu.memory_space<vmem>>, vector<1x128x256xbf16>
    %1 = vector.shape_cast %0 : vector<1x128x256xbf16> to vector<128x256xbf16>
    %c0_i32 = arith.constant 0 : i32
    %2 = arith.cmpi eq, %arg2, %c0_i32 : i32
    %3 = arith.extui %2 : i1 to i32
    %c0_i32_2 = arith.constant 0 : i32
    %4 = arith.cmpi ne, %3, %c0_i32_2 : i32
    scf.if %4 {
      %cst_25 = arith.constant 0.000000e+00 : f32
      %36 = vector.broadcast %cst_25 : f32 to vector<128x384xf32>
      %c0_26 = arith.constant 0 : index
      %c0_27 = arith.constant 0 : index
      %37 = vector.load %arg10[%c0_26, %c0_27] : memref<128x384xf32, #tpu.memory_space<vmem>>, vector<128x384xf32>
      tpu.vector_store %arg10[%c0_26, %c0_27], %36 {strides = array<i32>} : memref<128x384xf32, #tpu.memory_space<vmem>>, vector<128x384xf32>,
      %c0_28 = arith.constant 0 : index
      %c0_29 = arith.constant 0 : index
      %c0_30 = arith.constant 0 : index
      %38 = vector.load %arg5[%c0_28, %c0_29, %c0_30] : memref<1x256x16xbf16, #tpu.memory_space<vmem>>, vector<1x256x16xbf16>
      %39 = vector.shape_cast %38 : vector<1x256x16xbf16> to vector<256x16xbf16>
      %cst_31 = arith.constant dense<0.000000e+00> : vector<128x16xf32>
      %40 = tpu.matmul %1, %39, %cst_31 {dimension_numbers = #tpu.dot_dimension_numbers<[1], [0], [0], [1], [0, 0, 1, 1], [], []>} : vector<128x256xbf16>, vector<256x16xbf16>, vector<128x16xf32> -> vector<128x16xf32>
      %cst_32 = arith.constant 2.000000e+00 : f32
      %41 = vector.broadcast %cst_32 : f32 to vector<128x16xf32>
      %42 = arith.mulf %41, %40 : vector<128x16xf32>
      %43 = arith.truncf %42 : vector<128x16xf32> to vector<128x16xbf16>
      %c0_33 = arith.constant 0 : index
      %c0_34 = arith.constant 0 : index
      %44 = vector.load %arg11[%c0_33, %c0_34] : memref<128x16xbf16, #tpu.memory_space<vmem>>, vector<128x16xbf16>
      tpu.vector_store %arg11[%c0_33, %c0_34], %43 {strides = array<i32>} : memref<128x16xbf16, #tpu.memory_space<vmem>>, vector<128x16xbf16>,
    } else {
    }
    %c0_3 = arith.constant 0 : index
    %c0_4 = arith.constant 0 : index
    %c0_5 = arith.constant 0 : index
    %5 = vector.load %arg4[%c0_3, %c0_4, %c0_5] : memref<1x256x256xbf16, #tpu.memory_space<vmem>>, vector<1x256x256xbf16>
    %6 = vector.shape_cast %5 : vector<1x256x256xbf16> to vector<256x256xbf16>
    %cst = arith.constant dense<0.000000e+00> : vector<128x256xf32>
    %7 = tpu.matmul %1, %6, %cst {dimension_numbers = #tpu.dot_dimension_numbers<[1], [0], [0], [1], [0, 0, 1, 1], [], []>} : vector<128x256xbf16>, vector<256x256xbf16>, vector<128x256xf32> -> vector<128x256xf32>
    %c0_6 = arith.constant 0 : index
    %c0_7 = arith.constant 0 : index
    %8 = vector.load %arg11[%c0_6, %c0_7] : memref<128x16xbf16, #tpu.memory_space<vmem>>, vector<128x16xbf16>
    %c0_8 = arith.constant 0 : index
    %c0_9 = arith.constant 0 : index
    %c0_10 = arith.constant 0 : index
    %9 = vector.load %arg6[%c0_8, %c0_9, %c0_10] : memref<1x16x256xbf16, #tpu.memory_space<vmem>>, vector<1x16x256xbf16>
    %10 = vector.shape_cast %9 : vector<1x16x256xbf16> to vector<16x256xbf16>
    %cst_11 = arith.constant dense<0.000000e+00> : vector<128x256xf32>
    %11 = tpu.matmul %8, %10, %cst_11 {dimension_numbers = #tpu.dot_dimension_numbers<[1], [0], [0], [1], [0, 0, 1, 1], [], []>} : vector<128x16xbf16>, vector<16x256xbf16>, vector<128x256xf32> -> vector<128x256xf32>
    %12 = arith.addf %7, %11 : vector<128x256xf32>
    %13 = arith.mulf %12, %12 : vector<128x256xf32>
    %14 = arith.mulf %12, %13 : vector<128x256xf32>
    %cst_12 = arith.constant 4.471500e-02 : f32
    %15 = vector.broadcast %cst_12 : f32 to vector<128x256xf32>
    %16 = arith.mulf %15, %14 : vector<128x256xf32>
    %17 = arith.addf %12, %16 : vector<128x256xf32>
    %cst_13 = arith.constant 0.797884583 : f32
    %18 = vector.broadcast %cst_13 : f32 to vector<128x256xf32>
    %19 = arith.mulf %18, %17 : vector<128x256xf32>
    %20 = math.tanh %19 : vector<128x256xf32>
    %cst_14 = arith.constant 1.000000e+00 : f32
    %21 = vector.broadcast %cst_14 : f32 to vector<128x256xf32>
    %22 = arith.addf %21, %20 : vector<128x256xf32>
    %cst_15 = arith.constant 5.000000e-01 : f32
    %23 = vector.broadcast %cst_15 : f32 to vector<128x256xf32>
    %24 = arith.mulf %23, %22 : vector<128x256xf32>
    %25 = arith.mulf %12, %24 : vector<128x256xf32>
    %26 = arith.truncf %25 : vector<128x256xf32> to vector<128x256xbf16>
    %c0_16 = arith.constant 0 : index
    %c0_17 = arith.constant 0 : index
    %27 = vector.load %arg10[%c0_16, %c0_17] : memref<128x384xf32, #tpu.memory_space<vmem>>, vector<128x384xf32>
    %c0_18 = arith.constant 0 : index
    %c0_19 = arith.constant 0 : index
    %c0_20 = arith.constant 0 : index
    %28 = vector.load %arg7[%c0_18, %c0_19, %c0_20] : memref<1x256x384xbf16, #tpu.memory_space<vmem>>, vector<1x256x384xbf16>
    %29 = vector.shape_cast %28 : vector<1x256x384xbf16> to vector<256x384xbf16>
    %cst_21 = arith.constant dense<0.000000e+00> : vector<128x384xf32>
    %30 = tpu.matmul %26, %29, %cst_21 {dimension_numbers = #tpu.dot_dimension_numbers<[1], [0], [0], [1], [0, 0, 1, 1], [], []>} : vector<128x256xbf16>, vector<256x384xbf16>, vector<128x384xf32> -> vector<128x384xf32>
    %31 = arith.addf %27, %30 : vector<128x384xf32>
    %c0_22 = arith.constant 0 : index
    %c0_23 = arith.constant 0 : index
    %32 = vector.load %arg10[%c0_22, %c0_23] : memref<128x384xf32, #tpu.memory_space<vmem>>, vector<128x384xf32>
    tpu.vector_store %arg10[%c0_22, %c0_23], %31 {strides = array<i32>} : memref<128x384xf32, #tpu.memory_space<vmem>>, vector<128x384xf32>,
    %c1_i32 = arith.constant 1 : i32
    %33 = arith.cmpi eq, %arg2, %c1_i32 : i32
    %34 = arith.extui %33 : i1 to i32
    %c0_i32_24 = arith.constant 0 : i32
    %35 = arith.cmpi ne, %34, %c0_i32_24 : i32
    scf.if %35 {
      %c0_25 = arith.constant 0 : index
      %c0_26 = arith.constant 0 : index
      %36 = vector.load %arg10[%c0_25, %c0_26] : memref<128x384xf32, #tpu.memory_space<vmem>>, vector<128x384xf32>
      %37 = vector.extract_strided_slice %36 {offsets = [0, 0], sizes = [128, 16], strides = [1, 1]} : vector<128x384xf32> to vector<128x16xf32>
      %cst_27 = arith.constant 2.000000e+00 : f32
      %38 = vector.broadcast %cst_27 : f32 to vector<128x16xf32>
      %39 = arith.mulf %38, %37 : vector<128x16xf32>
      %40 = arith.truncf %39 : vector<128x16xf32> to vector<128x16xbf16>
      %41 = vector.extract_strided_slice %36 {offsets = [0, 128], sizes = [128, 256], strides = [1, 1]} : vector<128x384xf32> to vector<128x256xf32>
      %c0_28 = arith.constant 0 : index
      %c0_29 = arith.constant 0 : index
      %c0_30 = arith.constant 0 : index
      %42 = vector.load %arg8[%c0_28, %c0_29, %c0_30] : memref<1x16x256xbf16, #tpu.memory_space<vmem>>, vector<1x16x256xbf16>
      %43 = vector.shape_cast %42 : vector<1x16x256xbf16> to vector<16x256xbf16>
      %cst_31 = arith.constant dense<0.000000e+00> : vector<128x256xf32>
      %44 = tpu.matmul %40, %43, %cst_31 {dimension_numbers = #tpu.dot_dimension_numbers<[1], [0], [0], [1], [0, 0, 1, 1], [], []>} : vector<128x16xbf16>, vector<16x256xbf16>, vector<128x256xf32> -> vector<128x256xf32>
      %45 = arith.addf %41, %44 : vector<128x256xf32>
      %46 = arith.truncf %45 : vector<128x256xf32> to vector<128x256xbf16>
      %c0_32 = arith.constant 0 : index
      %c0_33 = arith.constant 0 : index
      %c0_34 = arith.constant 0 : index
      %47 = vector.load %arg9[%c0_32, %c0_33, %c0_34] : memref<1x128x256xbf16, #tpu.memory_space<vmem>>, vector<1x128x256xbf16>
      %48 = vector.shape_cast %47 : vector<1x128x256xbf16> to vector<128x256xbf16>
      %49 = vector.shape_cast %46 : vector<128x256xbf16> to vector<1x128x256xbf16>
      tpu.vector_store %arg9[%c0_32, %c0_33, %c0_34], %49 {strides = array<i32>} : memref<1x128x256xbf16, #tpu.memory_space<vmem>>, vector<1x128x256xbf16>,
    } else {
    }
    return
  }
  func.func @transform_0(%arg0: i32, %arg1: i32, %arg2: i32) -> (i32, i32, i32) {
    %c0_i32 = arith.constant 0 : i32
    %c0_i32_0 = arith.constant 0 : i32
    return %arg0, %arg1, %c0_i32 : i32, i32, i32
  }
  func.func @transform_1(%arg0: i32, %arg1: i32, %arg2: i32) -> (i32, i32, i32) {
    %c0_i32 = arith.constant 0 : i32
    %c0_i32_0 = arith.constant 0 : i32
    return %arg0, %c0_i32, %arg2 : i32, i32, i32
  }
  func.func @transform_2(%arg0: i32, %arg1: i32, %arg2: i32) -> (i32, i32, i32) {
    %c0_i32 = arith.constant 0 : i32
    %c0_i32_0 = arith.constant 0 : i32
    %c0_i32_1 = arith.constant 0 : i32
    return %arg0, %c0_i32, %c0_i32_0 : i32, i32, i32
  }
  func.func @transform_3(%arg0: i32, %arg1: i32, %arg2: i32) -> (i32, i32, i32) {
    %c0_i32 = arith.constant 0 : i32
    %c0_i32_0 = arith.constant 0 : i32
    return %arg0, %c0_i32, %arg2 : i32, i32, i32
  }
  func.func @transform_4(%arg0: i32, %arg1: i32, %arg2: i32) -> (i32, i32, i32) {
    %c0_i32 = arith.constant 0 : i32
    %c0_i32_0 = arith.constant 0 : i32
    return %arg0, %arg2, %c0_i32 : i32, i32, i32
  }
  func.func @transform_5(%arg0: i32, %arg1: i32, %arg2: i32) -> (i32, i32, i32) {
    %c0_i32 = arith.constant 0 : i32
    %c0_i32_0 = arith.constant 0 : i32
    %c0_i32_1 = arith.constant 0 : i32
    return %arg0, %c0_i32, %c0_i32_0 : i32, i32, i32
  }
  func.func @transform_6(%arg0: i32, %arg1: i32, %arg2: i32) -> (i32, i32, i32) {
    %c0_i32 = arith.constant 0 : i32
    %c0_i32_0 = arith.constant 0 : i32
    return %arg0, %arg1, %c0_i32 : i32, i32, i32
  }
}

</mosaic_0001>

<llo_original>
// kernel: tpu_custom_call.1
$region0: #{tpu_custom_call.1}
  #allocation0 [shape = 'u32[]', space=smem, size = 0x4, offset = 0x4, fixed_abs, tag = 'smem constant byte address 0x4 - core index']
  #allocation1 [shape = 'u32[144,128]{1,0:T(1,128)}', space=vmem, size = 0x12000, scoped, tag = 'internal scratch']
  #allocation2 [shape = 'f32[128,384]{1,0:T(8,128)}', space=vmem, size = 0x30000, scoped, tag = 'scratch operand']
  #allocation3 [shape = 'bf16[128,16]{1,0:T(16,128)(2,1)}', space=vmem, size = 0x8000, scoped, tag = 'scratch operand']
  %s0 = inlined_call_operand.hbm [shape: bf16[2,256,256], index: 0, kind: input, shape index: {}]
  %s1 = inlined_call_operand.hbm [shape: bf16[2,256,512], index: 1, kind: input, shape index: {}]
  %s2 = inlined_call_operand.vmem [shape: bf16[2,256,16], index: 2, kind: input, shape index: {}]
  %s3 = inlined_call_operand.vmem [shape: bf16[2,16,512], index: 3, kind: input, shape index: {}]
  %s4 = inlined_call_operand.hbm [shape: bf16[2,512,384], index: 4, kind: input, shape index: {}]
  %s5 = inlined_call_operand.vmem [shape: bf16[2,16,256], index: 5, kind: input, shape index: {}]
  %s6 = inlined_call_operand.hbm [shape: bf16[2,256,256], index: 6, kind: output, shape index: {}]
  %s7 = sld [smem:[#allocation0]]
  $region115: #{tpu_custom_call.1} parent=0
    _
  %s9 = ssub.s32 1, %s7
  %s10 = scalar_select 0, %s9, %s7
  $region1: #{tpu_custom_call.1} parent=0
    #allocation4 [shape = 'u8[131072]{0}', space=vmem, size = 0x20000, scoped, tag = 'input window, operand 0']
    #allocation5 [shape = 's32[2]{0}', space=sflag, size = 0x8, scoped, tag = 'scoped memory for tpu_custom_call.1']
    #allocation6 [shape = 's32[2]{0}', space=sflag, size = 0x8, scoped, tag = 'scoped memory for tpu_custom_call.1']
    #allocation7 [shape = 'u8[262144]{0}', space=vmem, size = 0x40000, scoped, tag = 'input window, operand 1']
    #allocation8 [shape = 's32[2]{0}', space=sflag, size = 0x8, scoped, tag = 'scoped memory for tpu_custom_call.1']
    #allocation9 [shape = 'u8[16384]{0}', space=vmem, size = 0x4000, scoped, tag = 'input window, operand 3']
    #allocation10 [shape = 'u8[393216]{0}', space=vmem, size = 0x60000, scoped, tag = 'input window, operand 4']
    #allocation11 [shape = 'u8[131072]{0}', space=vmem, size = 0x20000, scoped, tag = 'output window, operand 0']
    %11 = vsyncpa [#allocation5], 0
    %s12 = scalar_lea.sflag [#allocation5], 1
    %13 = vsyncpa %s12, 0
    %14 = vsyncpa [#allocation8], 0
    %s15 = scalar_lea.sflag [#allocation8], 1
    %16 = vsyncpa %s15, 0
    %17 = vsyncpa [#allocation6], 0
    %s18 = scalar_lea.sflag [#allocation6], 1
    %19 = vsyncpa %s18, 0
    loop: start=0, step=1, limit=10
    $region2: #{tpu_custom_call.1} parent=1 // loop_pre_header
      _
    $region3: #{tpu_custom_call.1} parent=1 // loop_header
      %s21 = sphi 0, %s25
      %p22 = scmp.ge.s32.totalorder %s21, 10
      %s28 = sphi 0, %s47
      %s29 = sphi 0, %s43
      %s30 = sphi 0, %s39
      %s31 = sphi 0, %s28
      %s32 = sphi 0, %s29
      %s33 = sphi 0, %s30
      %s34 = sphi 0, %s31
      %s35 = sphi 0, %s32
      %s36 = sphi 0, %s33
      %s52 = sphi 0, %s54
      %s55 = sphi 0, %s52
      %s56 = sphi 0, %s55
      %s72 = sphi 0, %s56
      %s80 = sphi 0, %s82
      %s83 = sphi 0, %s80
      %s84 = sphi 0, %s83
      %s100 = sphi 0, %s84
      %s106 = sphi 0, %s108
      %s109 = sphi 0, %s106
      %s110 = sphi 0, %s109
      %s126 = sphi 0, %s110
      %s134 = sphi 0, %s136
      %s137 = sphi 0, %s134
      %s138 = sphi 0, %s137
      %s154 = sphi 0, %s138
      %s162 = sphi 0, %s164
      %s165 = sphi 0, %s162
      %s166 = sphi 0, %s165
      %s182 = sphi 0, %s166
      %s188 = sphi 0, %s190
      %s191 = sphi 0, %s188
      %s192 = sphi 0, %s191
      %s208 = sphi 0, %s192
      %s216 = sphi 0, %s218
      %s219 = sphi 0, %s216
      %s220 = sphi 0, %s219
      %s236 = sphi 0, %s220
    $region4: #{tpu_custom_call.1} parent=1 // loop_header_branch
      %24 = sbr.rel (%p22) target = $region8
    $region5: #{tpu_custom_call.1} parent=1 // loop_body
      %s26 = ssub.s32 %s21, 1
      %s27 = ssub.s32 %s21, 2
      %s37 = sadd.s32 1, %s30
      %p38 = scmp.ge.s32.totalorder %s37, 2
      %s39 = scalar_select %p38, 0, %s37
      %s40 = sadd.s32 1, %s29
      %s41 = scalar_select %p38, %s40, %s29
      %p42 = scmp.ge.s32.totalorder %s41, 2
      %s43 = scalar_select %p42, 0, %s41
      %s44 = sadd.s32 1, %s28
      %s45 = scalar_select %p42, %s44, %s28
      %p46 = scmp.ge.s32.totalorder %s45, 2
      %s47 = scalar_select %p46, 0, %s45
      %s48 = ssub.s32 %s28, %s47
      %s49 = ssub.s32 %s29, %s43
      %s50 = sor.u32 %s48, %s49
      %p51 = scmp.eq.s32.totalorder %s50, 0
      %s53 = sadd.s32 %s52, 1
      %s54 = scalar_select %p51, %s52, %s53
      %p57 = pneg %p51
      %p58 = scmp.eq.s32.totalorder %s21, 7
      %p59 = por %p57, %p58
      %p60 = scmp.ne.s32.totalorder %s52, %s55
      %p61 = scmp.eq.s32.totalorder %s21, 0
      %p62 = por %p60, %p61
      %p63 = scmp.ne.s32.totalorder %s52, %s55
      %p64 = scmp.eq.s32.totalorder %s26, 7
      %p65 = por %p63, %p64
      %p66 = scmp.ne.s32.totalorder %s55, %s56
      %p67 = scmp.eq.s32.totalorder %s26, 0
      %p68 = por %p66, %p67
      %p69 = scmp.ne.s32.totalorder %s55, %s56
      %p70 = scmp.eq.s32.totalorder %s27, 7
      %p71 = por %p69, %p70
      %p73 = scmp.ne.s32.totalorder %s56, %s72
      %p74 = scmp.eq.s32.totalorder %s27, 0
      %p75 = por %p73, %p74
      %s76 = ssub.s32 %s28, %s47
      %s77 = ssub.s32 %s30, %s39
      %s78 = sor.u32 %s76, %s77
      %p79 = scmp.eq.s32.totalorder %s78, 0
      %s81 = sadd.s32 %s80, 1
      %s82 = scalar_select %p79, %s80, %s81
      %p85 = pneg %p79
      %p86 = scmp.eq.s32.totalorder %s21, 7
      %p87 = por %p85, %p86
      %p88 = scmp.ne.s32.totalorder %s80, %s83
      %p89 = scmp.eq.s32.totalorder %s21, 0
      %p90 = por %p88, %p89
      %p91 = scmp.ne.s32.totalorder %s80, %s83
      %p92 = scmp.eq.s32.totalorder %s26, 7
      %p93 = por %p91, %p92
      %p94 = scmp.ne.s32.totalorder %s83, %s84
      %p95 = scmp.eq.s32.totalorder %s26, 0
      %p96 = por %p94, %p95
      %p97 = scmp.ne.s32.totalorder %s83, %s84
      %p98 = scmp.eq.s32.totalorder %s27, 7
      %p99 = por %p97, %p98
      %p101 = scmp.ne.s32.totalorder %s84, %s100
      %p102 = scmp.eq.s32.totalorder %s27, 0
      %p103 = por %p101, %p102
      %s104 = ssub.s32 %s28, %s47
      %p105 = scmp.eq.s32.totalorder %s104, 0
      %s107 = sadd.s32 %s106, 1
      %s108 = scalar_select %p105, %s106, %s107
      %p111 = pneg %p105
      %p112 = scmp.eq.s32.totalorder %s21, 7
      %p113 = por %p111, %p112
      %p114 = scmp.ne.s32.totalorder %s106, %s109
      %p115 = scmp.eq.s32.totalorder %s21, 0
      %p116 = por %p114, %p115
      %p117 = scmp.ne.s32.totalorder %s106, %s109
      %p118 = scmp.eq.s32.totalorder %s26, 7
      %p119 = por %p117, %p118
      %p120 = scmp.ne.s32.totalorder %s109, %s110
      %p121 = scmp.eq.s32.totalorder %s26, 0
      %p122 = por %p120, %p121
      %p123 = scmp.ne.s32.totalorder %s109, %s110
      %p124 = scmp.eq.s32.totalorder %s27, 7
      %p125 = por %p123, %p124
      %p127 = scmp.ne.s32.totalorder %s110, %s126
      %p128 = scmp.eq.s32.totalorder %s27, 0
      %p129 = por %p127, %p128
      %s130 = ssub.s32 %s28, %s47
      %s131 = ssub.s32 %s30, %s39
      %s132 = sor.u32 %s130, %s131
      %p133 = scmp.eq.s32.totalorder %s132, 0
      %s135 = sadd.s32 %s134, 1
      %s136 = scalar_select %p133, %s134, %s135
      %p139 = pneg %p133
      %p140 = scmp.eq.s32.totalorder %s21, 7
      %p141 = por %p139, %p140
      %p142 = scmp.ne.s32.totalorder %s134, %s137
      %p143 = scmp.eq.s32.totalorder %s21, 0
      %p144 = por %p142, %p143
      %p145 = scmp.ne.s32.totalorder %s134, %s137
      %p146 = scmp.eq.s32.totalorder %s26, 7
      %p147 = por %p145, %p146
      %p148 = scmp.ne.s32.totalorder %s137, %s138
      %p149 = scmp.eq.s32.totalorder %s26, 0
      %p150 = por %p148, %p149
      %p151 = scmp.ne.s32.totalorder %s137, %s138
      %p152 = scmp.eq.s32.totalorder %s27, 7
      %p153 = por %p151, %p152
      %p155 = scmp.ne.s32.totalorder %s138, %s154
      %p156 = scmp.eq.s32.totalorder %s27, 0
      %p157 = por %p155, %p156
      %s158 = ssub.s32 %s28, %s47
      %s159 = ssub.s32 %s30, %s39
      %s160 = sor.u32 %s158, %s159
      %p161 = scmp.eq.s32.totalorder %s160, 0
      %s163 = sadd.s32 %s162, 1
      %s164 = scalar_select %p161, %s162, %s163
      %p167 = pneg %p161
      %p168 = scmp.eq.s32.totalorder %s21, 7
      %p169 = por %p167, %p168
      %p170 = scmp.ne.s32.totalorder %s162, %s165
      %p171 = scmp.eq.s32.totalorder %s21, 0
      %p172 = por %p170, %p171
      %p173 = scmp.ne.s32.totalorder %s162, %s165
      %p174 = scmp.eq.s32.totalorder %s26, 7
      %p175 = por %p173, %p174
      %p176 = scmp.ne.s32.totalorder %s165, %s166
      %p177 = scmp.eq.s32.totalorder %s26, 0
      %p178 = por %p176, %p177
      %p179 = scmp.ne.s32.totalorder %s165, %s166
      %p180 = scmp.eq.s32.totalorder %s27, 7
      %p181 = por %p179, %p180
      %p183 = scmp.ne.s32.totalorder %s166, %s182
      %p184 = scmp.eq.s32.totalorder %s27, 0
      %p185 = por %p183, %p184
      %s186 = ssub.s32 %s28, %s47
      %p187 = scmp.eq.s32.totalorder %s186, 0
      %s189 = sadd.s32 %s188, 1
      %s190 = scalar_select %p187, %s188, %s189
      %p193 = pneg %p187
      %p194 = scmp.eq.s32.totalorder %s21, 7
      %p195 = por %p193, %p194
      %p196 = scmp.ne.s32.totalorder %s188, %s191
      %p197 = scmp.eq.s32.totalorder %s21, 0
      %p198 = por %p196, %p197
      %p199 = scmp.ne.s32.totalorder %s188, %s191
      %p200 = scmp.eq.s32.totalorder %s26, 7
      %p201 = por %p199, %p200
      %p202 = scmp.ne.s32.totalorder %s191, %s192
      %p203 = scmp.eq.s32.totalorder %s26, 0
      %p204 = por %p202, %p203
      %p205 = scmp.ne.s32.totalorder %s191, %s192
      %p206 = scmp.eq.s32.totalorder %s27, 7
      %p207 = por %p205, %p206
      %p209 = scmp.ne.s32.totalorder %s192, %s208
      %p210 = scmp.eq.s32.totalorder %s27, 0
      %p211 = por %p209, %p210
      %s212 = ssub.s32 %s28, %s47
      %s213 = ssub.s32 %s29, %s43
      %s214 = sor.u32 %s212, %s213
      %p215 = scmp.eq.s32.totalorder %s214, 0
      %s217 = sadd.s32 %s216, 1
      %s218 = scalar_select %p215, %s216, %s217
      %p221 = pneg %p215
      %p222 = scmp.eq.s32.totalorder %s21, 7
      %p223 = por %p221, %p222
      %p224 = scmp.ne.s32.totalorder %s216, %s219
      %p225 = scmp.eq.s32.totalorder %s21, 0
      %p226 = por %p224, %p225
      %p227 = scmp.ne.s32.totalorder %s216, %s219
      %p228 = scmp.eq.s32.totalorder %s26, 7
      %p229 = por %p227, %p228
      %p230 = scmp.ne.s32.totalorder %s219, %s220
      %p231 = scmp.eq.s32.totalorder %s26, 0
      %p232 = por %p230, %p231
      %p233 = scmp.ne.s32.totalorder %s219, %s220
      %p234 = scmp.eq.s32.totalorder %s27, 7
      %p235 = por %p233, %p234
      %p237 = scmp.ne.s32.totalorder %s220, %s236
      %p238 = scmp.eq.s32.totalorder %s27, 0
      %p239 = por %p237, %p238
      %p240 = scmp.le.s32.totalorder 1, %s21
      %p241 = scmp.lt.s32.totalorder %s21, 9
      %p242 = pnand %p240, %p241
      %p243 = pneg %p242
      // Predicated region
      $region9: #{tpu_custom_call.1} parent=5 // pred_check
        _
      $region10: #{tpu_custom_call.1} parent=5 // pred_check_branch
        %245 = sbr.rel (%p242) target = $region12
      $region11: #{tpu_custom_call.1} parent=5 // pred_region
        %s246 = ssub.s32 %s21, 1
      $region12: #{tpu_custom_call.1} parent=5 // pred_fallthru
        _
      %p247 = scmp.lt.s32.totalorder %s21, 8
      // Predicated region
      $region13: #{tpu_custom_call.1} parent=5 // pred_check
        %p248 = pneg %p247
      $region14: #{tpu_custom_call.1} parent=5 // pred_check_branch
        %250 = sbr.rel (%p248) target = $region16
      $region15: #{tpu_custom_call.1} parent=5 // pred_region
        // Predicated region
        $region17: #{tpu_custom_call.1} parent=15 // pred_check
          %p251 = pneg %p62
        $region18: #{tpu_custom_call.1} parent=15 // pred_check_branch
          %253 = sbr.rel (%p251) target = $region20
        $region19: #{tpu_custom_call.1} parent=15 // pred_region
          %s254 = sand.u32 %s52, 1
          %s255 = scalar_lea.sflag [#allocation5], %s254
          %s256 = sand.u32 %s52, 1
          %s257 = smul.addr %s256, 128
          %s258 = scalar_lea.vmem [#allocation4], %s257
          %s259 = smul.u32 16, %s29
          %s261 = ssub.s32 2048, 2048
          %262 = vsyncadd %s255, %s261
          %s263 = smul.addr %s259, 2
          %s264 = smul.addr %s28, 64
          %s265 = sadd.s32 %s263, %s264
          %s266 = smul.addr %s265, 64
          %s267 = scalar_lea.hbm %s0, %s266
          %s268 = sshll.u32 %s258, 4
          %s269 = int_to_ptr.vmem [resolvable:$true] %s268
          %274 = dma.hbm_to_vmem [thread:$0]  %s267, 2048, %s269, %s255, 128, 128, 8
        $region20: #{tpu_custom_call.1} parent=15 // pred_fallthru
          _
        // Predicated region
        $region21: #{tpu_custom_call.1} parent=15 // pred_check
          %p275 = pneg %p90
        $region22: #{tpu_custom_call.1} parent=15 // pred_check_branch
          %277 = sbr.rel (%p275) target = $region24
        $region23: #{tpu_custom_call.1} parent=15 // pred_region
          %s278 = sand.u32 %s21, 1
          %s279 = scalar_lea.sflag [#allocation8], %s278
          %s280 = sand.u32 %s80, 1
          %s281 = smul.addr %s280, 256
          %s282 = scalar_lea.vmem [#allocation7], %s281
          %s283 = smul.u32 2, %s30
          %s285 = ssub.s32 4096, 4096
          %286 = vsyncadd %s279, %s285
          %s287 = smul.addr %s28, 128
          %s288 = sadd.s32 %s283, %s287
          %s289 = smul.addr %s288, 64
          %s290 = scalar_lea.hbm %s1, %s289
          %s291 = sshll.u32 %s282, 4
          %s292 = int_to_ptr.vmem [resolvable:$true] %s291
          %297 = dma.hbm_to_vmem [thread:$0]  %s290, 4096, %s292, %s279, 256, 128, 8
        $region24: #{tpu_custom_call.1} parent=15 // pred_fallthru
          _
        // Predicated region
        $region25: #{tpu_custom_call.1} parent=15 // pred_check
          %p298 = pneg %p116
        $region26: #{tpu_custom_call.1} parent=15 // pred_check_branch
          %300 = sbr.rel (%p298) target = $region28
        $region27: #{tpu_custom_call.1} parent=15 // pred_region
          %p301 = scmp.lt.s32.totalorder %s28, 1
          %s302 = scalar_select %p301, %s28, 1
          %s303 = smul.addr %s302, 32
          %s304 = smul.addr %s303, 4
          %s305 = scalar_lea.vmem %s2, %s304
        $region28: #{tpu_custom_call.1} parent=15 // pred_fallthru
          _
        // Predicated region
        $region29: #{tpu_custom_call.1} parent=15 // pred_check
          %p306 = pneg %p144
        $region30: #{tpu_custom_call.1} parent=15 // pred_check_branch
          %308 = sbr.rel (%p306) target = $region32
        $region31: #{tpu_custom_call.1} parent=15 // pred_region
          %s309 = sand.u32 %s134, 1
          %s310 = sand.u32 %s134, 1
          %s311 = smul.addr %s310, 16
          %s312 = scalar_lea.vmem [#allocation9], %s311
          %s313 = smul.u32 2, %s30
          %s314 = smul.addr %s28, 8
          %s315 = sadd.s32 %s313, %s314
          %s316 = smul.addr %s315, 4
          %s317 = scalar_lea.vmem %s3, %s316
          // Predicated region
          $region33: #{tpu_custom_call.1} parent=31 // pred_check
            _
          $region34: #{tpu_custom_call.1} parent=31 // pred_check_branch
            %319 = sbr.rel (0) target = $region36
          $region35: #{tpu_custom_call.1} parent=31 // pred_region
            // Predicated region
            $region37: #{tpu_custom_call.1} parent=35 // pred_check
              _
            $region38: #{tpu_custom_call.1} parent=35 // pred_check_branch
              %321 = sbr.rel (0) target = $region40
            $region39: #{tpu_custom_call.1} parent=35 // pred_region
              // Predicated region
              $region52: #{tpu_custom_call.1} parent=39 // pred_check
                _
              $region53: #{tpu_custom_call.1} parent=39 // pred_check_branch
                %338 = sbr.rel (0) target = $region55
              $region54: #{tpu_custom_call.1} parent=39 // pred_region
                loop: start=0, step=1, limit=1
                $region56: #{tpu_custom_call.1} parent=54 // loop_pre_header
                  _
                $region57: #{tpu_custom_call.1} parent=54 // loop_header
                  %s340 = sphi 0, %s344
                  %p341 = scmp.ge.s32.totalorder %s340, 1
                  %s345 = sphi %s317, %s317
                  %s346 = sphi %s312, %s312
                $region58: #{tpu_custom_call.1} parent=54 // loop_header_branch
                  %343 = sbr.rel (%p341) target = $region62
                $region59: #{tpu_custom_call.1} parent=54 // loop_body
                  %v347 = vld [vmem:[%s345] sm:$0xff]
                  %348 = vst [vmem:[%s346] sm:$0xff] %v347
                  %v349 = vld [vmem:[%s345 + $0x10] sm:$0xff]
                  %350 = vst [vmem:[%s346 + $0x8] sm:$0xff] %v349
                $region60: #{tpu_custom_call.1} parent=54 // loop_footer
                  %s344 = sadd.s32 1, %s340
                $region61: #{tpu_custom_call.1} parent=54 // loop_footer_branch
                  %339 = sbr.rel target = $region57
                $region62: #{tpu_custom_call.1} parent=54 // loop_exit
                  _
              $region55: #{tpu_custom_call.1} parent=39 // pred_fallthru
                _
              // Predicated region
              $region63: #{tpu_custom_call.1} parent=39 // pred_check
                _
              $region64: #{tpu_custom_call.1} parent=39 // pred_check_branch
                %352 = sbr.rel target = $region66
              $region65: #{tpu_custom_call.1} parent=39 // pred_region
                _
              $region66: #{tpu_custom_call.1} parent=39 // pred_fallthru
                _
            $region40: #{tpu_custom_call.1} parent=35 // pred_fallthru
              _
            // Predicated region
            $region41: #{tpu_custom_call.1} parent=35 // pred_check
              _
            $region42: #{tpu_custom_call.1} parent=35 // pred_check_branch
              %323 = sbr.rel target = $region44
            $region43: #{tpu_custom_call.1} parent=35 // pred_region
              loop: start=0, step=1, limit=1
              $region45: #{tpu_custom_call.1} parent=43 // loop_pre_header
                _
              $region46: #{tpu_custom_call.1} parent=43 // loop_header
                %s326 = sphi 0, %s330
                %p327 = scmp.ge.s32.totalorder %s326, 1
                %s331 = sphi %s317, %s317
                %s332 = sphi %s312, %s312
              $region47: #{tpu_custom_call.1} parent=43 // loop_header_branch
                %329 = sbr.rel (%p327) target = $region51
              $region48: #{tpu_custom_call.1} parent=43 // loop_body
                %v333 = vld [vmem:[%s331] sm:$0xff]
                %334 = vst [vmem:[%s332] sm:$0xff] %v333
                %v335 = vld [vmem:[%s331 + $0x10] sm:$0xff]
                %336 = vst [vmem:[%s332 + $0x8] sm:$0xff] %v335
              $region49: #{tpu_custom_call.1} parent=43 // loop_footer
                %s330 = sadd.s32 1, %s326
              $region50: #{tpu_custom_call.1} parent=43 // loop_footer_branch
                %325 = sbr.rel target = $region46
              $region51: #{tpu_custom_call.1} parent=43 // loop_exit
                _
            $region44: #{tpu_custom_call.1} parent=35 // pred_fallthru
              _
          $region36: #{tpu_custom_call.1} parent=31 // pred_fallthru
            _
          %353 = vnop
        $region32: #{tpu_custom_call.1} parent=15 // pred_fallthru
          _
        // Predicated region
        $region67: #{tpu_custom_call.1} parent=15 // pred_check
          %p354 = pneg %p172
        $region68: #{tpu_custom_call.1} parent=15 // pred_check_branch
          %356 = sbr.rel (%p354) target = $region70
        $region69: #{tpu_custom_call.1} parent=15 // pred_region
          %s357 = sand.u32 %s21, 1
          %s358 = scalar_lea.sflag [#allocation8], %s357
          %s359 = sand.u32 %s162, 1
          %s360 = smul.addr %s359, 384
          %s361 = scalar_lea.vmem [#allocation10], %s360
          %s362 = smul.u32 32, %s30
          %s364 = ssub.s32 6144, 6144
          %365 = vsyncadd %s358, %s364
          %s366 = smul.addr %s362, 3
          %s367 = smul.addr %s28, 192
          %s368 = sadd.s32 %s366, %s367
          %s369 = smul.addr %s368, 64
          %s370 = scalar_lea.hbm %s4, %s369
          %s371 = sshll.u32 %s361, 4
          %s372 = int_to_ptr.vmem [resolvable:$true] %s371
          %377 = dma.hbm_to_vmem [thread:$0]  %s370, 6144, %s372, %s358, 192, 192, 12
        $region70: #{tpu_custom_call.1} parent=15 // pred_fallthru
          _
        // Predicated region
        $region71: #{tpu_custom_call.1} parent=15 // pred_check
          %p378 = pneg %p198
        $region72: #{tpu_custom_call.1} parent=15 // pred_check_branch
          %380 = sbr.rel (%p378) target = $region74
        $region73: #{tpu_custom_call.1} parent=15 // pred_region
          %p381 = scmp.lt.s32.totalorder %s28, 1
          %s382 = scalar_select %p381, %s28, 1
          %s383 = smul.addr %s382, 4
          %s384 = smul.addr %s383, 4
          %s385 = scalar_lea.vmem %s5, %s384
        $region74: #{tpu_custom_call.1} parent=15 // pred_fallthru
          _
      $region16: #{tpu_custom_call.1} parent=5 // pred_fallthru
        _
      %p386 = scmp.le.s32.totalorder 1, %s21
      %p387 = scmp.lt.s32.totalorder %s21, 9
      %p388 = pnand %p386, %p387
      %p389 = pneg %p388
      // Predicated region
      $region75: #{tpu_custom_call.1} parent=5 // pred_check
        _
      $region76: #{tpu_custom_call.1} parent=5 // pred_check_branch
        %391 = sbr.rel (%p388) target = $region78
      $region77: #{tpu_custom_call.1} parent=5 // pred_region
        %s392 = ssub.s32 %s21, 1
        %s393 = sand.u32 %s55, 1
        %s394 = scalar_lea.sflag [#allocation5], %s393
        %s395 = sand.u32 %s55, 1
        %s396 = smul.addr %s395, 128
        %s397 = scalar_lea.vmem [#allocation4], %s396
        // Predicated region
        $region79: #{tpu_custom_call.1} parent=77 // pred_check
          %p398 = pneg %p68
        $region80: #{tpu_custom_call.1} parent=77 // pred_check_branch
          %400 = sbr.rel (%p398) target = $region82
        $region81: #{tpu_custom_call.1} parent=77 // pred_region
          %401 = dma.done %s394, 2048
        $region82: #{tpu_custom_call.1} parent=77 // pred_fallthru
          _
        %s402 = sand.u32 %s26, 1
        %s403 = scalar_lea.sflag [#allocation8], %s402
        %s404 = sand.u32 %s83, 1
        %s405 = smul.addr %s404, 256
        %s406 = scalar_lea.vmem [#allocation7], %s405
        // Predicated region
        $region83: #{tpu_custom_call.1} parent=77 // pred_check
          %p407 = pneg %p96
        $region84: #{tpu_custom_call.1} parent=77 // pred_check_branch
          %409 = sbr.rel (%p407) target = $region86
        $region85: #{tpu_custom_call.1} parent=77 // pred_region
          %410 = dma.done %s403, 4096
        $region86: #{tpu_custom_call.1} parent=77 // pred_fallthru
          _
        %s411 = sand.u32 %s137, 1
        %s412 = sand.u32 %s137, 1
        %s413 = smul.addr %s412, 16
        %s414 = scalar_lea.vmem [#allocation9], %s413
        // Predicated region
        $region87: #{tpu_custom_call.1} parent=77 // pred_check
          %p415 = pneg %p150
        $region88: #{tpu_custom_call.1} parent=77 // pred_check_branch
          %417 = sbr.rel (%p415) target = $region90
        $region89: #{tpu_custom_call.1} parent=77 // pred_region
          _
        $region90: #{tpu_custom_call.1} parent=77 // pred_fallthru
          _
        %s418 = sand.u32 %s26, 1
        %s419 = scalar_lea.sflag [#allocation8], %s418
        %s420 = sand.u32 %s165, 1
        %s421 = smul.addr %s420, 384
        %s422 = scalar_lea.vmem [#allocation10], %s421
        // Predicated region
        $region91: #{tpu_custom_call.1} parent=77 // pred_check
          %p423 = pneg %p178
        $region92: #{tpu_custom_call.1} parent=77 // pred_check_branch
          %425 = sbr.rel (%p423) target = $region94
        $region93: #{tpu_custom_call.1} parent=77 // pred_region
          %426 = dma.done %s419, 6144
        $region94: #{tpu_custom_call.1} parent=77 // pred_fallthru
          _
        %s427 = sand.u32 %s55, 1
        %s428 = scalar_lea.sflag [#allocation5], %s427
        %s429 = sand.u32 %s55, 1
        %s430 = smul.addr %s429, 128
        %s431 = scalar_lea.vmem [#allocation4], %s430
        %p432 = pneg %p68
        %p433 = pneg %p65
        %s434 = sand.u32 %s26, 1
        %s435 = scalar_lea.sflag [#allocation8], %s434
        %s436 = sand.u32 %s83, 1
        %s437 = smul.addr %s436, 256
        %s438 = scalar_lea.vmem [#allocation7], %s437
        %p439 = pneg %p96
        %p440 = pneg %p93
        %p441 = scmp.lt.s32.totalorder %s31, 1
        %s442 = scalar_select %p441, %s31, 1
        %s443 = smul.addr %s442, 32
        %s444 = smul.addr %s443, 4
        %s445 = scalar_lea.vmem %s2, %s444
        %p446 = pneg %p122
        %p447 = pneg %p119
        %s448 = sand.u32 %s137, 1
        %s449 = sand.u32 %s137, 1
        %s450 = smul.addr %s449, 16
        %s451 = scalar_lea.vmem [#allocation9], %s450
        %p452 = pneg %p150
        %p453 = pneg %p147
        %s454 = sand.u32 %s26, 1
        %s455 = scalar_lea.sflag [#allocation8], %s454
        %s456 = sand.u32 %s165, 1
        %s457 = smul.addr %s456, 384
        %s458 = scalar_lea.vmem [#allocation10], %s457
        %p459 = pneg %p178
        %p460 = pneg %p175
        %p461 = scmp.lt.s32.totalorder %s31, 1
        %s462 = scalar_select %p461, %s31, 1
        %s463 = smul.addr %s462, 4
        %s464 = smul.addr %s463, 4
        %s465 = scalar_lea.vmem %s5, %s464
        %p466 = pneg %p204
        %p467 = pneg %p201
        %p468 = pneg %p232
        %p469 = pneg %p229
        %s470 = sand.u32 %s219, 1
        %s471 = scalar_lea.sflag [#allocation6], %s470
        %s472 = sand.u32 %s219, 1
        %s473 = smul.addr %s472, 128
        %s474 = scalar_lea.vmem [#allocation11], %s473
        %s475 = smul.u32 16, %s32
        %s476 = smul.u32 2, %s33
        %p477 = scmp.lt.s32.totalorder %s31, 1
        %s478 = scalar_select %p477, %s31, 1
        %s479 = smul.addr %s478, 32
        %s480 = smul.addr %s479, 4
        %s481 = scalar_lea.vmem %s2, %s480
        %s482 = smul.u32 2, %s33
        %s483 = smul.u32 32, %s33
        %p484 = scmp.lt.s32.totalorder %s31, 1
        %s485 = scalar_select %p484, %s31, 1
        %s486 = smul.addr %s485, 4
        %s487 = smul.addr %s486, 4
        %s488 = scalar_lea.vmem %s5, %s487
        %s489 = smul.u32 16, %s32
        %v491 = vld [vmem:[%s397] sm:$0xff]
        %v492 = vld [vmem:[%s397 + $0x8] sm:$0xff]
        %v493 = vld [vmem:[%s397 + $0x10] sm:$0xff]
        %v494 = vld [vmem:[%s397 + $0x18] sm:$0xff]
        %v495 = vld [vmem:[%s397 + $0x20] sm:$0xff]
        %v496 = vld [vmem:[%s397 + $0x28] sm:$0xff]
        %v497 = vld [vmem:[%s397 + $0x30] sm:$0xff]
        %v498 = vld [vmem:[%s397 + $0x38] sm:$0xff]
        %v499 = vld [vmem:[%s397 + $0x40] sm:$0xff]
        %v500 = vld [vmem:[%s397 + $0x48] sm:$0xff]
        %v501 = vld [vmem:[%s397 + $0x50] sm:$0xff]
        %v502 = vld [vmem:[%s397 + $0x58] sm:$0xff]
        %v503 = vld [vmem:[%s397 + $0x60] sm:$0xff]
        %v504 = vld [vmem:[%s397 + $0x68] sm:$0xff]
        %v505 = vld [vmem:[%s397 + $0x70] sm:$0xff]
        %v506 = vld [vmem:[%s397 + $0x78] sm:$0xff]
        %p507 = scmp.eq.s32.totalorder %s33, 0
        // Predicated region
        $region95: #{tpu_custom_call.1} parent=77 // pred_check
          %p508 = pneg %p507
        $region96: #{tpu_custom_call.1} parent=77 // pred_check_branch
          %510 = sbr.rel (%p508) target = $region98
        $region97: #{tpu_custom_call.1} parent=77 // pred_region
          %511 = vst [vmem:[#allocation2] sm:$0xff] 0.0
          %512 = vst [vmem:[#allocation2 + $0x8] sm:$0xff] 0.0
          %513 = vst [vmem:[#allocation2 + $0x10] sm:$0xff] 0.0
          %514 = vst [vmem:[#allocation2 + $0x18] sm:$0xff] 0.0
          %515 = vst [vmem:[#allocation2 + $0x20] sm:$0xff] 0.0
          %516 = vst [vmem:[#allocation2 + $0x28] sm:$0xff] 0.0
          %517 = vst [vmem:[#allocation2 + $0x30] sm:$0xff] 0.0
          %518 = vst [vmem:[#allocation2 + $0x38] sm:$0xff] 0.0
          %519 = vst [vmem:[#allocation2 + $0x40] sm:$0xff] 0.0
          %520 = vst [vmem:[#allocation2 + $0x48] sm:$0xff] 0.0
          %521 = vst [vmem:[#allocation2 + $0x50] sm:$0xff] 0.0
          %522 = vst [vmem:[#allocation2 + $0x58] sm:$0xff] 0.0
          %523 = vst [vmem:[#allocation2 + $0x60] sm:$0xff] 0.0
          %524 = vst [vmem:[#allocation2 + $0x68] sm:$0xff] 0.0
          %525 = vst [vmem:[#allocation2 + $0x70] sm:$0xff] 0.0
          %526 = vst [vmem:[#allocation2 + $0x78] sm:$0xff] 0.0
          %527 = vst [vmem:[#allocation2 + $0x80] sm:$0xff] 0.0
          %528 = vst [vmem:[#allocation2 + $0x88] sm:$0xff] 0.0
          %529 = vst [vmem:[#allocation2 + $0x90] sm:$0xff] 0.0
          %530 = vst [vmem:[#allocation2 + $0x98] sm:$0xff] 0.0
          %531 = vst [vmem:[#allocation2 + $0xa0] sm:$0xff] 0.0
          %532 = vst [vmem:[#allocation2 + $0xa8] sm:$0xff] 0.0
          %533 = vst [vmem:[#allocation2 + $0xb0] sm:$0xff] 0.0
          %534 = vst [vmem:[#allocation2 + $0xb8] sm:$0xff] 0.0
          %535 = vst [vmem:[#allocation2 + $0xc0] sm:$0xff] 0.0
          %536 = vst [vmem:[#allocation2 + $0xc8] sm:$0xff] 0.0
          %537 = vst [vmem:[#allocation2 + $0xd0] sm:$0xff] 0.0
          %538 = vst [vmem:[#allocation2 + $0xd8] sm:$0xff] 0.0
          %539 = vst [vmem:[#allocation2 + $0xe0] sm:$0xff] 0.0
          %540 = vst [vmem:[#allocation2 + $0xe8] sm:$0xff] 0.0
          %541 = vst [vmem:[#allocation2 + $0xf0] sm:$0xff] 0.0
          %542 = vst [vmem:[#allocation2 + $0xf8] sm:$0xff] 0.0
          %543 = vst [vmem:[#allocation2 + $0x100] sm:$0xff] 0.0
          %544 = vst [vmem:[#allocation2 + $0x108] sm:$0xff] 0.0
          %545 = vst [vmem:[#allocation2 + $0x110] sm:$0xff] 0.0
          %546 = vst [vmem:[#allocation2 + $0x118] sm:$0xff] 0.0
          %547 = vst [vmem:[#allocation2 + $0x120] sm:$0xff] 0.0
          %548 = vst [vmem:[#allocation2 + $0x128] sm:$0xff] 0.0
          %549 = vst [vmem:[#allocation2 + $0x130] sm:$0xff] 0.0
          %550 = vst [vmem:[#allocation2 + $0x138] sm:$0xff] 0.0
          %551 = vst [vmem:[#allocation2 + $0x140] sm:$0xff] 0.0
          %552 = vst [vmem:[#allocation2 + $0x148] sm:$0xff] 0.0
          %553 = vst [vmem:[#allocation2 + $0x150] sm:$0xff] 0.0
          %554 = vst [vmem:[#allocation2 + $0x158] sm:$0xff] 0.0
          %555 = vst [vmem:[#allocation2 + $0x160] sm:$0xff] 0.0
          %556 = vst [vmem:[#allocation2 + $0x168] sm:$0xff] 0.0
          %557 = vst [vmem:[#allocation2 + $0x170] sm:$0xff] 0.0
          %558 = vst [vmem:[#allocation2 + $0x178] sm:$0xff] 0.0
          %v559 = vld [vmem:[%s481] sm:$0xf]
          %v560 = vld [vmem:[%s481 + $0x4] sm:$0xf]
          %v561 = vld [vmem:[%s481 + $0x8] sm:$0xf]
          %v562 = vld [vmem:[%s481 + $0xc] sm:$0xf]
          %v563 = vld [vmem:[%s481 + $0x10] sm:$0xf]
          %v564 = vld [vmem:[%s481 + $0x14] sm:$0xf]
          %v565 = vld [vmem:[%s481 + $0x18] sm:$0xf]
          %v566 = vld [vmem:[%s481 + $0x1c] sm:$0xf]
          %v567 = vld [vmem:[%s481 + $0x20] sm:$0xf]
          %v568 = vld [vmem:[%s481 + $0x24] sm:$0xf]
          %v569 = vld [vmem:[%s481 + $0x28] sm:$0xf]
          %v570 = vld [vmem:[%s481 + $0x2c] sm:$0xf]
          %v571 = vld [vmem:[%s481 + $0x30] sm:$0xf]
          %v572 = vld [vmem:[%s481 + $0x34] sm:$0xf]
          %v573 = vld [vmem:[%s481 + $0x38] sm:$0xf]
          %v574 = vld [vmem:[%s481 + $0x3c] sm:$0xf]
          %v575 = vld [vmem:[%s481 + $0x40] sm:$0xf]
          %v576 = vld [vmem:[%s481 + $0x44] sm:$0xf]
          %v577 = vld [vmem:[%s481 + $0x48] sm:$0xf]
          %v578 = vld [vmem:[%s481 + $0x4c] sm:$0xf]
          %v579 = vld [vmem:[%s481 + $0x50] sm:$0xf]
          %v580 = vld [vmem:[%s481 + $0x54] sm:$0xf]
          %v581 = vld [vmem:[%s481 + $0x58] sm:$0xf]
          %v582 = vld [vmem:[%s481 + $0x5c] sm:$0xf]
          %v583 = vld [vmem:[%s481 + $0x60] sm:$0xf]
          %v584 = vld [vmem:[%s481 + $0x64] sm:$0xf]
          %v585 = vld [vmem:[%s481 + $0x68] sm:$0xf]
          %v586 = vld [vmem:[%s481 + $0x6c] sm:$0xf]
          %v587 = vld [vmem:[%s481 + $0x70] sm:$0xf]
          %v588 = vld [vmem:[%s481 + $0x74] sm:$0xf]
          %v589 = vld [vmem:[%s481 + $0x78] sm:$0xf]
          %v590 = vld [vmem:[%s481 + $0x7c] sm:$0xf]
          %v607 = vunpack.c.l.b16 %v491
          %v608 = vunpack.c.h.b16 %v491
          %v609 = vunpack.c.l.b16 %v492
          %v610 = vunpack.c.h.b16 %v492
          %v611 = vunpack.c.l.b16 %v493
          %v612 = vunpack.c.h.b16 %v493
          %v613 = vunpack.c.l.b16 %v494
          %v614 = vunpack.c.h.b16 %v494
          %v615 = vunpack.c.l.b16 %v495
          %v616 = vunpack.c.h.b16 %v495
          %v617 = vunpack.c.l.b16 %v496
          %v618 = vunpack.c.h.b16 %v496
          %v619 = vunpack.c.l.b16 %v497
          %v620 = vunpack.c.h.b16 %v497
          %v621 = vunpack.c.l.b16 %v498
          %v622 = vunpack.c.h.b16 %v498
          %v623 = vunpack.c.l.b16 %v499
          %v624 = vunpack.c.h.b16 %v499
          %v625 = vunpack.c.l.b16 %v500
          %v626 = vunpack.c.h.b16 %v500
          %v627 = vunpack.c.l.b16 %v501
          %v628 = vunpack.c.h.b16 %v501
          %v629 = vunpack.c.l.b16 %v502
          %v630 = vunpack.c.h.b16 %v502
          %v631 = vunpack.c.l.b16 %v503
          %v632 = vunpack.c.h.b16 %v503
          %v633 = vunpack.c.l.b16 %v504
          %v634 = vunpack.c.h.b16 %v504
          %v635 = vunpack.c.l.b16 %v505
          %v636 = vunpack.c.h.b16 %v505
          %v637 = vunpack.c.l.b16 %v506
          %v638 = vunpack.c.h.b16 %v506
          %v639 = vpack.c.b16 %v609, %v607
          %v640 = vpack.c.b16 %v610, %v608
          %v641 = vpack.c.b16 %v613, %v611
          %v642 = vpack.c.b16 %v614, %v612
          %v643 = vpack.c.b16 %v617, %v615
          %v644 = vpack.c.b16 %v618, %v616
          %v645 = vpack.c.b16 %v621, %v619
          %v646 = vpack.c.b16 %v622, %v620
          %v647 = vpack.c.b16 %v625, %v623
          %v648 = vpack.c.b16 %v626, %v624
          %v649 = vpack.c.b16 %v629, %v627
          %v650 = vpack.c.b16 %v630, %v628
          %v651 = vpack.c.b16 %v633, %v631
          %v652 = vpack.c.b16 %v634, %v632
          %v653 = vpack.c.b16 %v637, %v635
          %v654 = vpack.c.b16 %v638, %v636
          %v703 = vunpack.c.l.b16 %v559
          %v704 = vunpack.c.l.b16 %v560
          %v705 = vunpack.c.l.b16 %v561
          %v706 = vunpack.c.l.b16 %v562
          %v707 = vunpack.c.l.b16 %v563
          %v708 = vunpack.c.l.b16 %v564
          %v709 = vunpack.c.l.b16 %v565
          %v710 = vunpack.c.l.b16 %v566
          %v711 = vunpack.c.l.b16 %v567
          %v712 = vunpack.c.l.b16 %v568
          %v713 = vunpack.c.l.b16 %v569
          %v714 = vunpack.c.l.b16 %v570
          %v715 = vunpack.c.l.b16 %v571
          %v716 = vunpack.c.l.b16 %v572
          %v717 = vunpack.c.l.b16 %v573
          %v718 = vunpack.c.l.b16 %v574
          %v719 = vunpack.c.l.b16 %v575
          %v720 = vunpack.c.l.b16 %v576
          %v721 = vunpack.c.l.b16 %v577
          %v722 = vunpack.c.l.b16 %v578
          %v723 = vunpack.c.l.b16 %v579
          %v724 = vunpack.c.l.b16 %v580
          %v725 = vunpack.c.l.b16 %v581
          %v726 = vunpack.c.l.b16 %v582
          %v727 = vunpack.c.l.b16 %v583
          %v728 = vunpack.c.l.b16 %v584
          %v729 = vunpack.c.l.b16 %v585
          %v730 = vunpack.c.l.b16 %v586
          %v731 = vunpack.c.l.b16 %v587
          %v732 = vunpack.c.l.b16 %v588
          %v733 = vunpack.c.l.b16 %v589
          %v734 = vunpack.c.l.b16 %v590
          %v735 = vpack.c.b16 %v704, %v703
          %v736 = vpack.c.b16 %v706, %v705
          %v737 = vpack.c.b16 %v708, %v707
          %v738 = vpack.c.b16 %v710, %v709
          %v739 = vpack.c.b16 %v712, %v711
          %v740 = vpack.c.b16 %v714, %v713
          %v741 = vpack.c.b16 %v716, %v715
          %v742 = vpack.c.b16 %v718, %v717
          %v743 = vpack.c.b16 %v720, %v719
          %v744 = vpack.c.b16 %v722, %v721
          %v745 = vpack.c.b16 %v724, %v723
          %v746 = vpack.c.b16 %v726, %v725
          %v747 = vpack.c.b16 %v728, %v727
          %v748 = vpack.c.b16 %v730, %v729
          %v749 = vpack.c.b16 %v732, %v731
          %v750 = vpack.c.b16 %v734, %v733
          %767 = vmatprep.subr.bf16.mxu0 0
          %768 = vmatpush1.bf16.msra.mxu0 %v735
          %769 = vmatprep.subr.bf16.mxu0 0
          %770 = vmatpush1.bf16.msra.mxu0 %v736
          %771 = vmatprep.subr.bf16.mxu0 0
          %772 = vmatpush1.bf16.msra.mxu0 %v737
          %773 = vmatprep.subr.bf16.mxu0 0
          %774 = vmatpush1.bf16.msra.mxu0 %v738
          %775 = vmatprep.subr.bf16.mxu0 0
          %776 = vmatpush1.bf16.msra.mxu0 %v739
          %777 = vmatprep.subr.bf16.mxu0 0
          %778 = vmatpush1.bf16.msra.mxu0 %v740
          %779 = vmatprep.subr.bf16.mxu0 0
          %780 = vmatpush1.bf16.msra.mxu0 %v741
          %781 = vmatprep.subr.bf16.mxu0 0
          %782 = vmatpush1.bf16.msra.mxu0 %v742
          %783 = vmatprep.subr.bf16.mxu0 0
          %784 = vmatpush1.bf16.msra.mxu0 %v743
          %785 = vmatprep.subr.bf16.mxu0 0
          %786 = vmatpush1.bf16.msra.mxu0 %v744
          %787 = vmatprep.subr.bf16.mxu0 0
          %788 = vmatpush1.bf16.msra.mxu0 %v745
          %789 = vmatprep.subr.bf16.mxu0 0
          %790 = vmatpush1.bf16.msra.mxu0 %v746
          %791 = vmatprep.subr.bf16.mxu0 0
          %792 = vmatpush1.bf16.msra.mxu0 %v747
          %793 = vmatprep.subr.bf16.mxu0 0
          %794 = vmatpush1.bf16.msra.mxu0 %v748
          %795 = vmatprep.subr.bf16.mxu0 0
          %796 = vmatpush1.bf16.msra.mxu0 %v749
          %797 = vmatprep.subr.bf16.mxu0 0
          %798 = vmatpush1.bf16.msra.mxu0 %v750
          %799 = vmatprep.mubr.bf16.mxu0 %v640
          %800 = vmatmul.mubr.bf16.gmra.mrb[0].mxu0 %v639
          %v801 = vpop.f32.mrb[0].mxu0
          %v802 = vadd.f32 0.0, %v801
          %v803 = vpop.f32.mrb[0].mxu0
          %v804 = vpop.f32.mrb[0].mxu0
          %v805 = vadd.f32 0.0, %v804
          %v806 = vpop.f32.mrb[0].mxu0
          %807 = vmatprep.mubr.bf16.mxu0 %v642
          %808 = vmatmul.mubr.bf16.gmra.mrb[0].mxu0 %v641
          %v809 = vpop.f32.mrb[0].mxu0
          %v810 = vadd.f32 0.0, %v809
          %v811 = vpop.f32.mrb[0].mxu0
          %v812 = vpop.f32.mrb[0].mxu0
          %v813 = vadd.f32 0.0, %v812
          %v814 = vpop.f32.mrb[0].mxu0
          %815 = vmatprep.mubr.bf16.mxu0 %v644
          %816 = vmatmul.mubr.bf16.gmra.mrb[0].mxu0 %v643
          %v817 = vpop.f32.mrb[0].mxu0
          %v818 = vadd.f32 0.0, %v817
          %v819 = vpop.f32.mrb[0].mxu0
          %v820 = vpop.f32.mrb[0].mxu0
          %v821 = vadd.f32 0.0, %v820
          %v822 = vpop.f32.mrb[0].mxu0
          %823 = vmatprep.mubr.bf16.mxu0 %v646
          %824 = vmatmul.mubr.bf16.gmra.mrb[0].mxu0 %v645
          %v825 = vpop.f32.mrb[0].mxu0
          %v826 = vadd.f32 0.0, %v825
          %v827 = vpop.f32.mrb[0].mxu0
          %v828 = vpop.f32.mrb[0].mxu0
          %v829 = vadd.f32 0.0, %v828
          %v830 = vpop.f32.mrb[0].mxu0
          %831 = vmatprep.mubr.bf16.mxu0 %v648
          %832 = vmatmul.mubr.bf16.gmra.mrb[0].mxu0 %v647
          %v833 = vpop.f32.mrb[0].mxu0
          %v834 = vadd.f32 0.0, %v833
          %v835 = vpop.f32.mrb[0].mxu0
          %v836 = vpop.f32.mrb[0].mxu0
          %v837 = vadd.f32 0.0, %v836
          %v838 = vpop.f32.mrb[0].mxu0
          %839 = vmatprep.mubr.bf16.mxu0 %v650
          %840 = vmatmul.mubr.bf16.gmra.mrb[0].mxu0 %v649
          %v841 = vpop.f32.mrb[0].mxu0
          %v842 = vadd.f32 0.0, %v841
          %v843 = vpop.f32.mrb[0].mxu0
          %v844 = vpop.f32.mrb[0].mxu0
          %v845 = vadd.f32 0.0, %v844
          %v846 = vpop.f32.mrb[0].mxu0
          %847 = vmatprep.mubr.bf16.mxu0 %v652
          %848 = vmatmul.mubr.bf16.gmra.mrb[0].mxu0 %v651
          %v849 = vpop.f32.mrb[0].mxu0
          %v850 = vadd.f32 0.0, %v849
          %v851 = vpop.f32.mrb[0].mxu0
          %v852 = vpop.f32.mrb[0].mxu0
          %v853 = vadd.f32 0.0, %v852
          %v854 = vpop.f32.mrb[0].mxu0
          %855 = vmatprep.mubr.bf16.mxu0 %v654
          %856 = vmatmul.mubr.bf16.gmra.mrb[0].mxu0 %v653
          %v857 = vpop.f32.mrb[0].mxu0
          %v858 = vadd.f32 0.0, %v857
          %v859 = vpop.f32.mrb[0].mxu0
          %v860 = vpop.f32.mrb[0].mxu0
          %v861 = vadd.f32 0.0, %v860
          %v862 = vpop.f32.mrb[0].mxu0
          %863 = vdwg.mxu0
          %v864 = vmul.f32 %v802, 2.0
          %v865 = vmul.f32 %v805, 2.0
          %v866 = vmul.f32 %v810, 2.0
          %v867 = vmul.f32 %v813, 2.0
          %v868 = vmul.f32 %v818, 2.0
          %v869 = vmul.f32 %v821, 2.0
          %v870 = vmul.f32 %v826, 2.0
          %v871 = vmul.f32 %v829, 2.0
          %v872 = vmul.f32 %v834, 2.0
          %v873 = vmul.f32 %v837, 2.0
          %v874 = vmul.f32 %v842, 2.0
          %v875 = vmul.f32 %v845, 2.0
          %v876 = vmul.f32 %v850, 2.0
          %v877 = vmul.f32 %v853, 2.0
          %v878 = vmul.f32 %v858, 2.0
          %v879 = vmul.f32 %v861, 2.0
          %v880 = vpack.c.bf16 %v865, %v864
          %v881 = vpack.c.bf16 %v867, %v866
          %v882 = vpack.c.bf16 %v869, %v868
          %v883 = vpack.c.bf16 %v871, %v870
          %v884 = vpack.c.bf16 %v873, %v872
          %v885 = vpack.c.bf16 %v875, %v874
          %v886 = vpack.c.bf16 %v877, %v876
          %v887 = vpack.c.bf16 %v879, %v878
          %vm888 = vcmask 130048
          %889 = vst.msk [vmem:[#allocation3] sm:$0xff] %vm888, %v880
          %890 = vst.msk [vmem:[#allocation3 + $0x8] sm:$0xff] %vm888, %v881
          %891 = vst.msk [vmem:[#allocation3 + $0x10] sm:$0xff] %vm888, %v882
          %892 = vst.msk [vmem:[#allocation3 + $0x18] sm:$0xff] %vm888, %v883
          %893 = vst.msk [vmem:[#allocation3 + $0x20] sm:$0xff] %vm888, %v884
          %894 = vst.msk [vmem:[#allocation3 + $0x28] sm:$0xff] %vm888, %v885
          %895 = vst.msk [vmem:[#allocation3 + $0x30] sm:$0xff] %vm888, %v886
          %896 = vst.msk [vmem:[#allocation3 + $0x38] sm:$0xff] %vm888, %v887
        $region98: #{tpu_custom_call.1} parent=77 // pred_fallthru
          _
        %v897 = vld [vmem:[%s406] sm:$0xff]
        %v898 = vld [vmem:[%s406 + $0x8] sm:$0xff]
        %v899 = vld [vmem:[%s406 + $0x10] sm:$0xff]
        %v900 = vld [vmem:[%s406 + $0x18] sm:$0xff]
        %v901 = vld [vmem:[%s406 + $0x20] sm:$0xff]
        %v902 = vld [vmem:[%s406 + $0x28] sm:$0xff]
        %v903 = vld [vmem:[%s406 + $0x30] sm:$0xff]
        %v904 = vld [vmem:[%s406 + $0x38] sm:$0xff]
        %v905 = vld [vmem:[%s406 + $0x40] sm:$0xff]
        %v906 = vld [vmem:[%s406 + $0x48] sm:$0xff]
        %v907 = vld [vmem:[%s406 + $0x50] sm:$0xff]
        %v908 = vld [vmem:[%s406 + $0x58] sm:$0xff]
        %v909 = vld [vmem:[%s406 + $0x60] sm:$0xff]
        %v910 = vld [vmem:[%s406 + $0x68] sm:$0xff]
        %v911 = vld [vmem:[%s406 + $0x70] sm:$0xff]
        %v912 = vld [vmem:[%s406 + $0x78] sm:$0xff]
        %v913 = vld [vmem:[%s406 + $0x80] sm:$0xff]
        %v914 = vld [vmem:[%s406 + $0x88] sm:$0xff]
        %v915 = vld [vmem:[%s406 + $0x90] sm:$0xff]
        %v916 = vld [vmem:[%s406 + $0x98] sm:$0xff]
        %v917 = vld [vmem:[%s406 + $0xa0] sm:$0xff]
        %v918 = vld [vmem:[%s406 + $0xa8] sm:$0xff]
        %v919 = vld [vmem:[%s406 + $0xb0] sm:$0xff]
        %v920 = vld [vmem:[%s406 + $0xb8] sm:$0xff]
        %v921 = vld [vmem:[%s406 + $0xc0] sm:$0xff]
        %v922 = vld [vmem:[%s406 + $0xc8] sm:$0xff]
        %v923 = vld [vmem:[%s406 + $0xd0] sm:$0xff]
        %v924 = vld [vmem:[%s406 + $0xd8] sm:$0xff]
        %v925 = vld [vmem:[%s406 + $0xe0] sm:$0xff]
        %v926 = vld [vmem:[%s406 + $0xe8] sm:$0xff]
        %v927 = vld [vmem:[%s406 + $0xf0] sm:$0xff]
        %v928 = vld [vmem:[%s406 + $0xf8] sm:$0xff]
        %v929 = vld [vmem:[#allocation3] sm:$0xff]
        %v930 = vld [vmem:[#allocation3 + $0x8] sm:$0xff]
        %v931 = vld [vmem:[#allocation3 + $0x10] sm:$0xff]
        %v932 = vld [vmem:[#allocation3 + $0x18] sm:$0xff]
        %v933 = vld [vmem:[#allocation3 + $0x20] sm:$0xff]
        %v934 = vld [vmem:[#allocation3 + $0x28] sm:$0xff]
        %v935 = vld [vmem:[#allocation3 + $0x30] sm:$0xff]
        %v936 = vld [vmem:[#allocation3 + $0x38] sm:$0xff]
        %v937 = vld [vmem:[%s414] sm:$0xff]
        %v938 = vld [vmem:[%s414 + $0x8] sm:$0xff]
        %v941 = vunpack.c.l.b16 %v937
        %v942 = vunpack.c.h.b16 %v937
        %v943 = vunpack.c.l.b16 %v938
        %v944 = vunpack.c.h.b16 %v938
        %v945 = vpack.c.b16 %v943, %v941
        %v946 = vpack.c.b16 %v944, %v942
        %vm949 = vcmask 130048
        %v951 = vsel %vm949, %v929, 0
        %v954 = vsel %vm949, %v930, 0
        %v957 = vsel %vm949, %v931, 0
        %v960 = vsel %vm949, %v932, 0
        %v963 = vsel %vm949, %v933, 0
        %v966 = vsel %vm949, %v934, 0
        %v969 = vsel %vm949, %v935, 0
        %v972 = vsel %vm949, %v936, 0
        %974 = vmatprep.subr.bf16.mxu0 %v946
        %975 = vmatpush1.bf16.msra.mxu0 %v945
        %976 = vmatprep.subr.bf16.mxu0 0
        %977 = vmatpush1.bf16.msra.mxu0 0
        %978 = vmatprep.subr.bf16.mxu0 0
        %979 = vmatpush1.bf16.msra.mxu0 0
        %980 = vmatprep.subr.bf16.mxu0 0
        %981 = vmatpush1.bf16.msra.mxu0 0
        %982 = vmatprep.subr.bf16.mxu0 0
        %983 = vmatpush1.bf16.msra.mxu0 0
        %984 = vmatprep.subr.bf16.mxu0 0
        %985 = vmatpush1.bf16.msra.mxu0 0
        %986 = vmatprep.subr.bf16.mxu0 0
        %987 = vmatpush1.bf16.msra.mxu0 0
        %988 = vmatprep.subr.bf16.mxu0 0
        %989 = vmatpush1.bf16.msra.mxu0 0
        %990 = vmatprep.subr.bf16.mxu0 0
        %991 = vmatpush1.bf16.msra.mxu0 0
        %992 = vmatprep.subr.bf16.mxu0 0
        %993 = vmatpush1.bf16.msra.mxu0 0
        %994 = vmatprep.subr.bf16.mxu0 0
        %995 = vmatpush1.bf16.msra.mxu0 0
        %996 = vmatprep.subr.bf16.mxu0 0
        %997 = vmatpush1.bf16.msra.mxu0 0
        %998 = vmatprep.subr.bf16.mxu0 0
        %999 = vmatpush1.bf16.msra.mxu0 0
        %1000 = vmatprep.subr.bf16.mxu0 0
        %1001 = vmatpush1.bf16.msra.mxu0 0
        %1002 = vmatprep.subr.bf16.mxu0 0
        %1003 = vmatpush1.bf16.msra.mxu0 0
        %1004 = vmatprep.subr.bf16.mxu0 0
        %1005 = vmatpush1.bf16.msra.mxu0 0
        %1006 = vmatprep.mubr.bf16.mxu0 0
        %1007 = vmatmul.mubr.bf16.gmra.mrb[0].mxu0 %v951
        %v1008 = vpop.f32.mrb[0].mxu0
        %v1009 = vadd.f32 0.0, %v1008
        %v1010 = vpop.f32.mrb[0].mxu0
        %v1011 = vadd.f32 0.0, %v1010
        %v1012 = vpop.f32.mrb[0].mxu0
        %v1013 = vadd.f32 0.0, %v1012
        %v1014 = vpop.f32.mrb[0].mxu0
        %v1015 = vadd.f32 0.0, %v1014
        %1016 = vmatprep.mubr.bf16.mxu0 0
        %1017 = vmatmul.mubr.bf16.gmra.mrb[0].mxu0 %v954
        %v1018 = vpop.f32.mrb[0].mxu0
        %v1019 = vadd.f32 0.0, %v1018
        %v1020 = vpop.f32.mrb[0].mxu0
        %v1021 = vadd.f32 0.0, %v1020
        %v1022 = vpop.f32.mrb[0].mxu0
        %v1023 = vadd.f32 0.0, %v1022
        %v1024 = vpop.f32.mrb[0].mxu0
        %v1025 = vadd.f32 0.0, %v1024
        %1026 = vmatprep.mubr.bf16.mxu0 0
        %1027 = vmatmul.mubr.bf16.gmra.mrb[0].mxu0 %v957
        %v1028 = vpop.f32.mrb[0].mxu0
        %v1029 = vadd.f32 0.0, %v1028
        %v1030 = vpop.f32.mrb[0].mxu0
        %v1031 = vadd.f32 0.0, %v1030
        %v1032 = vpop.f32.mrb[0].mxu0
        %v1033 = vadd.f32 0.0, %v1032
        %v1034 = vpop.f32.mrb[0].mxu0
        %v1035 = vadd.f32 0.0, %v1034
        %1036 = vmatprep.mubr.bf16.mxu0 0
        %1037 = vmatmul.mubr.bf16.gmra.mrb[0].mxu0 %v960
        %v1038 = vpop.f32.mrb[0].mxu0
        %v1039 = vadd.f32 0.0, %v1038
        %v1040 = vpop.f32.mrb[0].mxu0
        %v1041 = vadd.f32 0.0, %v1040
        %v1042 = vpop.f32.mrb[0].mxu0
        %v1043 = vadd.f32 0.0, %v1042
        %v1044 = vpop.f32.mrb[0].mxu0
        %v1045 = vadd.f32 0.0, %v1044
        %1046 = vmatprep.mubr.bf16.mxu0 0
        %1047 = vmatmul.mubr.bf16.gmra.mrb[0].mxu0 %v963
        %v1048 = vpop.f32.mrb[0].mxu0
        %v1049 = vadd.f32 0.0, %v1048
        %v1050 = vpop.f32.mrb[0].mxu0
        %v1051 = vadd.f32 0.0, %v1050
        %v1052 = vpop.f32.mrb[0].mxu0
        %v1053 = vadd.f32 0.0, %v1052
        %v1054 = vpop.f32.mrb[0].mxu0
        %v1055 = vadd.f32 0.0, %v1054
        %1056 = vmatprep.mubr.bf16.mxu0 0
        %1057 = vmatmul.mubr.bf16.gmra.mrb[0].mxu0 %v966
        %v1058 = vpop.f32.mrb[0].mxu0
        %v1059 = vadd.f32 0.0, %v1058
        %v1060 = vpop.f32.mrb[0].mxu0
        %v1061 = vadd.f32 0.0, %v1060
        %v1062 = vpop.f32.mrb[0].mxu0
        %v1063 = vadd.f32 0.0, %v1062
        %v1064 = vpop.f32.mrb[0].mxu0
        %v1065 = vadd.f32 0.0, %v1064
        %1066 = vmatprep.mubr.bf16.mxu0 0
        %1067 = vmatmul.mubr.bf16.gmra.mrb[0].mxu0 %v969
        %v1068 = vpop.f32.mrb[0].mxu0
        %v1069 = vadd.f32 0.0, %v1068
        %v1070 = vpop.f32.mrb[0].mxu0
        %v1071 = vadd.f32 0.0, %v1070
        %v1072 = vpop.f32.mrb[0].mxu0
        %v1073 = vadd.f32 0.0, %v1072
        %v1074 = vpop.f32.mrb[0].mxu0
        %v1075 = vadd.f32 0.0, %v1074
        %1076 = vmatprep.mubr.bf16.mxu0 0
        %1077 = vmatmul.mubr.bf16.gmra.mrb[0].mxu0 %v972
        %v1078 = vpop.f32.mrb[0].mxu0
        %v1079 = vadd.f32 0.0, %v1078
        %v1080 = vpop.f32.mrb[0].mxu0
        %v1081 = vadd.f32 0.0, %v1080
        %v1082 = vpop.f32.mrb[0].mxu0
        %v1083 = vadd.f32 0.0, %v1082
        %v1084 = vpop.f32.mrb[0].mxu0
        %v1085 = vadd.f32 0.0, %v1084
        %1086 = vdwg.mxu0
        %v1103 = vunpack.c.l.b16 %v491
        %v1104 = vunpack.c.h.b16 %v491
        %v1105 = vunpack.c.l.b16 %v492
        %v1106 = vunpack.c.h.b16 %v492
        %v1107 = vunpack.c.l.b16 %v493
        %v1108 = vunpack.c.h.b16 %v493
        %v1109 = vunpack.c.l.b16 %v494
        %v1110 = vunpack.c.h.b16 %v494
        %v1111 = vunpack.c.l.b16 %v495
        %v1112 = vunpack.c.h.b16 %v495
        %v1113 = vunpack.c.l.b16 %v496
        %v1114 = vunpack.c.h.b16 %v496
        %v1115 = vunpack.c.l.b16 %v497
        %v1116 = vunpack.c.h.b16 %v497
        %v1117 = vunpack.c.l.b16 %v498
        %v1118 = vunpack.c.h.b16 %v498
        %v1119 = vunpack.c.l.b16 %v499
        %v1120 = vunpack.c.h.b16 %v499
        %v1121 = vunpack.c.l.b16 %v500
        %v1122 = vunpack.c.h.b16 %v500
        %v1123 = vunpack.c.l.b16 %v501
        %v1124 = vunpack.c.h.b16 %v501
        %v1125 = vunpack.c.l.b16 %v502
        %v1126 = vunpack.c.h.b16 %v502
        %v1127 = vunpack.c.l.b16 %v503
        %v1128 = vunpack.c.h.b16 %v503
        %v1129 = vunpack.c.l.b16 %v504
        %v1130 = vunpack.c.h.b16 %v504
        %v1131 = vunpack.c.l.b16 %v505
        %v1132 = vunpack.c.h.b16 %v505
        %v1133 = vunpack.c.l.b16 %v506
        %v1134 = vunpack.c.h.b16 %v506
        %v1135 = vpack.c.b16 %v1105, %v1103
        %v1136 = vpack.c.b16 %v1106, %v1104
        %v1137 = vpack.c.b16 %v1109, %v1107
        %v1138 = vpack.c.b16 %v1110, %v1108
        %v1139 = vpack.c.b16 %v1113, %v1111
        %v1140 = vpack.c.b16 %v1114, %v1112
        %v1141 = vpack.c.b16 %v1117, %v1115
        %v1142 = vpack.c.b16 %v1118, %v1116
        %v1143 = vpack.c.b16 %v1121, %v1119
        %v1144 = vpack.c.b16 %v1122, %v1120
        %v1145 = vpack.c.b16 %v1125, %v1123
        %v1146 = vpack.c.b16 %v1126, %v1124
        %v1147 = vpack.c.b16 %v1129, %v1127
        %v1148 = vpack.c.b16 %v1130, %v1128
        %v1149 = vpack.c.b16 %v1133, %v1131
        %v1150 = vpack.c.b16 %v1134, %v1132
        %v1199 = vunpack.c.l.b16 %v897
        %v1200 = vunpack.c.h.b16 %v897
        %v1201 = vunpack.c.l.b16 %v898
        %v1202 = vunpack.c.h.b16 %v898
        %v1203 = vunpack.c.l.b16 %v899
        %v1204 = vunpack.c.h.b16 %v899
        %v1205 = vunpack.c.l.b16 %v900
        %v1206 = vunpack.c.h.b16 %v900
        %v1207 = vunpack.c.l.b16 %v901
        %v1208 = vunpack.c.h.b16 %v901
        %v1209 = vunpack.c.l.b16 %v902
        %v1210 = vunpack.c.h.b16 %v902
        %v1211 = vunpack.c.l.b16 %v903
        %v1212 = vunpack.c.h.b16 %v903
        %v1213 = vunpack.c.l.b16 %v904
        %v1214 = vunpack.c.h.b16 %v904
        %v1215 = vunpack.c.l.b16 %v905
        %v1216 = vunpack.c.h.b16 %v905
        %v1217 = vunpack.c.l.b16 %v906
        %v1218 = vunpack.c.h.b16 %v906
        %v1219 = vunpack.c.l.b16 %v907
        %v1220 = vunpack.c.h.b16 %v907
        %v1221 = vunpack.c.l.b16 %v908
        %v1222 = vunpack.c.h.b16 %v908
        %v1223 = vunpack.c.l.b16 %v909
        %v1224 = vunpack.c.h.b16 %v909
        %v1225 = vunpack.c.l.b16 %v910
        %v1226 = vunpack.c.h.b16 %v910
        %v1227 = vunpack.c.l.b16 %v911
        %v1228 = vunpack.c.h.b16 %v911
        %v1229 = vunpack.c.l.b16 %v912
        %v1230 = vunpack.c.h.b16 %v912
        %v1231 = vunpack.c.l.b16 %v913
        %v1232 = vunpack.c.h.b16 %v913
        %v1233 = vunpack.c.l.b16 %v914
        %v1234 = vunpack.c.h.b16 %v914
        %v1235 = vunpack.c.l.b16 %v915
        %v1236 = vunpack.c.h.b16 %v915
        %v1237 = vunpack.c.l.b16 %v916
        %v1238 = vunpack.c.h.b16 %v916
        %v1239 = vunpack.c.l.b16 %v917
        %v1240 = vunpack.c.h.b16 %v917
        %v1241 = vunpack.c.l.b16 %v918
        %v1242 = vunpack.c.h.b16 %v918
        %v1243 = vunpack.c.l.b16 %v919
        %v1244 = vunpack.c.h.b16 %v919
        %v1245 = vunpack.c.l.b16 %v920
        %v1246 = vunpack.c.h.b16 %v920
        %v1247 = vunpack.c.l.b16 %v921
        %v1248 = vunpack.c.h.b16 %v921
        %v1249 = vunpack.c.l.b16 %v922
        %v1250 = vunpack.c.h.b16 %v922
        %v1251 = vunpack.c.l.b16 %v923
        %v1252 = vunpack.c.h.b16 %v923
        %v1253 = vunpack.c.l.b16 %v924
        %v1254 = vunpack.c.h.b16 %v924
        %v1255 = vunpack.c.l.b16 %v925
        %v1256 = vunpack.c.h.b16 %v925
        %v1257 = vunpack.c.l.b16 %v926
        %v1258 = vunpack.c.h.b16 %v926
        %v1259 = vunpack.c.l.b16 %v927
        %v1260 = vunpack.c.h.b16 %v927
        %v1261 = vunpack.c.l.b16 %v928
        %v1262 = vunpack.c.h.b16 %v928
        %v1263 = vpack.c.b16 %v1201, %v1199
        %v1264 = vpack.c.b16 %v1202, %v1200
        %v1265 = vpack.c.b16 %v1205, %v1203
        %v1266 = vpack.c.b16 %v1206, %v1204
        %v1267 = vpack.c.b16 %v1209, %v1207
        %v1268 = vpack.c.b16 %v1210, %v1208
        %v1269 = vpack.c.b16 %v1213, %v1211
        %v1270 = vpack.c.b16 %v1214, %v1212
        %v1271 = vpack.c.b16 %v1217, %v1215
        %v1272 = vpack.c.b16 %v1218, %v1216
        %v1273 = vpack.c.b16 %v1221, %v1219
        %v1274 = vpack.c.b16 %v1222, %v1220
        %v1275 = vpack.c.b16 %v1225, %v1223
        %v1276 = vpack.c.b16 %v1226, %v1224
        %v1277 = vpack.c.b16 %v1229, %v1227
        %v1278 = vpack.c.b16 %v1230, %v1228
        %v1279 = vpack.c.b16 %v1233, %v1231
        %v1280 = vpack.c.b16 %v1234, %v1232
        %v1281 = vpack.c.b16 %v1237, %v1235
        %v1282 = vpack.c.b16 %v1238, %v1236
        %v1283 = vpack.c.b16 %v1241, %v1239
        %v1284 = vpack.c.b16 %v1242, %v1240
        %v1285 = vpack.c.b16 %v1245, %v1243
        %v1286 = vpack.c.b16 %v1246, %v1244
        %v1287 = vpack.c.b16 %v1249, %v1247
        %v1288 = vpack.c.b16 %v1250, %v1248
        %v1289 = vpack.c.b16 %v1253, %v1251
        %v1290 = vpack.c.b16 %v1254, %v1252
        %v1291 = vpack.c.b16 %v1257, %v1255
        %v1292 = vpack.c.b16 %v1258, %v1256
        %v1293 = vpack.c.b16 %v1261, %v1259
        %v1294 = vpack.c.b16 %v1262, %v1260
        %1327 = vmatprep.subr.bf16.mxu0 %v1264
        %1328 = vmatpush1.bf16.msra.mxu0 %v1263
        %1329 = vmatprep.subr.bf16.mxu0 %v1266
        %1330 = vmatpush1.bf16.msra.mxu0 %v1265
        %1331 = vmatprep.subr.bf16.mxu0 %v1268
        %1332 = vmatpush1.bf16.msra.mxu0 %v1267
        %1333 = vmatprep.subr.bf16.mxu0 %v1270
        %1334 = vmatpush1.bf16.msra.mxu0 %v1269
        %1335 = vmatprep.subr.bf16.mxu0 %v1272
        %1336 = vmatpush1.bf16.msra.mxu0 %v1271
        %1337 = vmatprep.subr.bf16.mxu0 %v1274
        %1338 = vmatpush1.bf16.msra.mxu0 %v1273
        %1339 = vmatprep.subr.bf16.mxu0 %v1276
        %1340 = vmatpush1.bf16.msra.mxu0 %v1275
        %1341 = vmatprep.subr.bf16.mxu0 %v1278
        %1342 = vmatpush1.bf16.msra.mxu0 %v1277
        %1343 = vmatprep.subr.bf16.mxu0 %v1280
        %1344 = vmatpush1.bf16.msra.mxu0 %v1279
        %1345 = vmatprep.subr.bf16.mxu0 %v1282
        %1346 = vmatpush1.bf16.msra.mxu0 %v1281
        %1347 = vmatprep.subr.bf16.mxu0 %v1284
        %1348 = vmatpush1.bf16.msra.mxu0 %v1283
        %1349 = vmatprep.subr.bf16.mxu0 %v1286
        %1350 = vmatpush1.bf16.msra.mxu0 %v1285
        %1351 = vmatprep.subr.bf16.mxu0 %v1288
        %1352 = vmatpush1.bf16.msra.mxu0 %v1287
        %1353 = vmatprep.subr.bf16.mxu0 %v1290
        %1354 = vmatpush1.bf16.msra.mxu0 %v1289
        %1355 = vmatprep.subr.bf16.mxu0 %v1292
        %1356 = vmatpush1.bf16.msra.mxu0 %v1291
        %1357 = vmatprep.subr.bf16.mxu0 %v1294
        %1358 = vmatpush1.bf16.msra.mxu0 %v1293
        %1359 = vmatprep.mubr.bf16.mxu0 %v1136
        %1360 = vmatmul.mubr.bf16.gmra.mrb[0].mxu0 %v1135
        %v1361 = vpop.f32.mrb[0].mxu0
        %v1362 = vadd.f32 %v1009, %v1361
        %v1363 = vpop.f32.mrb[0].mxu0
        %v1364 = vadd.f32 %v1011, %v1363
        %v1365 = vpop.f32.mrb[0].mxu0
        %v1366 = vadd.f32 %v1013, %v1365
        %v1367 = vpop.f32.mrb[0].mxu0
        %v1368 = vadd.f32 %v1015, %v1367
        %1369 = vmatprep.mubr.bf16.mxu0 %v1138
        %1370 = vmatmul.mubr.bf16.gmra.mrb[0].mxu0 %v1137
        %v1371 = vpop.f32.mrb[0].mxu0
        %v1372 = vadd.f32 %v1019, %v1371
        %v1373 = vpop.f32.mrb[0].mxu0
        %v1374 = vadd.f32 %v1021, %v1373
        %v1375 = vpop.f32.mrb[0].mxu0
        %v1376 = vadd.f32 %v1023, %v1375
        %v1377 = vpop.f32.mrb[0].mxu0
        %v1378 = vadd.f32 %v1025, %v1377
        %1379 = vmatprep.mubr.bf16.mxu0 %v1140
        %1380 = vmatmul.mubr.bf16.gmra.mrb[0].mxu0 %v1139
        %v1381 = vpop.f32.mrb[0].mxu0
        %v1382 = vadd.f32 %v1029, %v1381
        %v1383 = vpop.f32.mrb[0].mxu0
        %v1384 = vadd.f32 %v1031, %v1383
        %v1385 = vpop.f32.mrb[0].mxu0
        %v1386 = vadd.f32 %v1033, %v1385
        %v1387 = vpop.f32.mrb[0].mxu0
        %v1388 = vadd.f32 %v1035, %v1387
        %1389 = vmatprep.mubr.bf16.mxu0 %v1142
        %1390 = vmatmul.mubr.bf16.gmra.mrb[0].mxu0 %v1141
        %v1391 = vpop.f32.mrb[0].mxu0
        %v1392 = vadd.f32 %v1039, %v1391
        %v1393 = vpop.f32.mrb[0].mxu0
        %v1394 = vadd.f32 %v1041, %v1393
        %v1395 = vpop.f32.mrb[0].mxu0
        %v1396 = vadd.f32 %v1043, %v1395
        %v1397 = vpop.f32.mrb[0].mxu0
        %v1398 = vadd.f32 %v1045, %v1397
        %1399 = vmatprep.mubr.bf16.mxu0 %v1144
        %1400 = vmatmul.mubr.bf16.gmra.mrb[0].mxu0 %v1143
        %v1401 = vpop.f32.mrb[0].mxu0
        %v1402 = vadd.f32 %v1049, %v1401
        %v1403 = vpop.f32.mrb[0].mxu0
        %v1404 = vadd.f32 %v1051, %v1403
        %v1405 = vpop.f32.mrb[0].mxu0
        %v1406 = vadd.f32 %v1053, %v1405
        %v1407 = vpop.f32.mrb[0].mxu0
        %v1408 = vadd.f32 %v1055, %v1407
        %1409 = vmatprep.mubr.bf16.mxu0 %v1146
        %1410 = vmatmul.mubr.bf16.gmra.mrb[0].mxu0 %v1145
        %v1411 = vpop.f32.mrb[0].mxu0
        %v1412 = vadd.f32 %v1059, %v1411
        %v1413 = vpop.f32.mrb[0].mxu0
        %v1414 = vadd.f32 %v1061, %v1413
        %v1415 = vpop.f32.mrb[0].mxu0
        %v1416 = vadd.f32 %v1063, %v1415
        %v1417 = vpop.f32.mrb[0].mxu0
        %v1418 = vadd.f32 %v1065, %v1417
        %1419 = vmatprep.mubr.bf16.mxu0 %v1148
        %1420 = vmatmul.mubr.bf16.gmra.mrb[0].mxu0 %v1147
        %v1421 = vpop.f32.mrb[0].mxu0
        %v1422 = vadd.f32 %v1069, %v1421
        %v1423 = vpop.f32.mrb[0].mxu0
        %v1424 = vadd.f32 %v1071, %v1423
        %v1425 = vpop.f32.mrb[0].mxu0
        %v1426 = vadd.f32 %v1073, %v1425
        %v1427 = vpop.f32.mrb[0].mxu0
        %v1428 = vadd.f32 %v1075, %v1427
        %1429 = vmatprep.mubr.bf16.mxu0 %v1150
        %1430 = vmatmul.mubr.bf16.gmra.mrb[0].mxu0 %v1149
        %v1431 = vpop.f32.mrb[0].mxu0
        %v1432 = vadd.f32 %v1079, %v1431
        %v1433 = vpop.f32.mrb[0].mxu0
        %v1434 = vadd.f32 %v1081, %v1433
        %v1435 = vpop.f32.mrb[0].mxu0
        %v1436 = vadd.f32 %v1083, %v1435
        %v1437 = vpop.f32.mrb[0].mxu0
        %v1438 = vadd.f32 %v1085, %v1437
        %1439 = vdwg.mxu0
        %v1440 = vmul.f32 %v1362, %v1362
        %v1441 = vmul.f32 %v1364, %v1364
        %v1442 = vmul.f32 %v1366, %v1366
        %v1443 = vmul.f32 %v1368, %v1368
        %v1444 = vmul.f32 %v1372, %v1372
        %v1445 = vmul.f32 %v1374, %v1374
        %v1446 = vmul.f32 %v1376, %v1376
        %v1447 = vmul.f32 %v1378, %v1378
        %v1448 = vmul.f32 %v1382, %v1382
        %v1449 = vmul.f32 %v1384, %v1384
        %v1450 = vmul.f32 %v1386, %v1386
        %v1451 = vmul.f32 %v1388, %v1388
        %v1452 = vmul.f32 %v1392, %v1392
        %v1453 = vmul.f32 %v1394, %v1394
        %v1454 = vmul.f32 %v1396, %v1396
        %v1455 = vmul.f32 %v1398, %v1398
        %v1456 = vmul.f32 %v1402, %v1402
        %v1457 = vmul.f32 %v1404, %v1404
        %v1458 = vmul.f32 %v1406, %v1406
        %v1459 = vmul.f32 %v1408, %v1408
        %v1460 = vmul.f32 %v1412, %v1412
        %v1461 = vmul.f32 %v1414, %v1414
        %v1462 = vmul.f32 %v1416, %v1416
        %v1463 = vmul.f32 %v1418, %v1418
        %v1464 = vmul.f32 %v1422, %v1422
        %v1465 = vmul.f32 %v1424, %v1424
        %v1466 = vmul.f32 %v1426, %v1426
        %v1467 = vmul.f32 %v1428, %v1428
        %v1468 = vmul.f32 %v1432, %v1432
        %v1469 = vmul.f32 %v1434, %v1434
        %v1470 = vmul.f32 %v1436, %v1436
        %v1471 = vmul.f32 %v1438, %v1438
        %v1472 = vmul.f32 %v1362, %v1440
        %v1473 = vmul.f32 %v1364, %v1441
        %v1474 = vmul.f32 %v1366, %v1442
        %v1475 = vmul.f32 %v1368, %v1443
        %v1476 = vmul.f32 %v1372, %v1444
        %v1477 = vmul.f32 %v1374, %v1445
        %v1478 = vmul.f32 %v1376, %v1446
        %v1479 = vmul.f32 %v1378, %v1447
        %v1480 = vmul.f32 %v1382, %v1448
        %v1481 = vmul.f32 %v1384, %v1449
        %v1482 = vmul.f32 %v1386, %v1450
        %v1483 = vmul.f32 %v1388, %v1451
        %v1484 = vmul.f32 %v1392, %v1452
        %v1485 = vmul.f32 %v1394, %v1453
        %v1486 = vmul.f32 %v1396, %v1454
        %v1487 = vmul.f32 %v1398, %v1455
        %v1488 = vmul.f32 %v1402, %v1456
        %v1489 = vmul.f32 %v1404, %v1457
        %v1490 = vmul.f32 %v1406, %v1458
        %v1491 = vmul.f32 %v1408, %v1459
        %v1492 = vmul.f32 %v1412, %v1460
        %v1493 = vmul.f32 %v1414, %v1461
        %v1494 = vmul.f32 %v1416, %v1462
        %v1495 = vmul.f32 %v1418, %v1463
        %v1496 = vmul.f32 %v1422, %v1464
        %v1497 = vmul.f32 %v1424, %v1465
        %v1498 = vmul.f32 %v1426, %v1466
        %v1499 = vmul.f32 %v1428, %v1467
        %v1500 = vmul.f32 %v1432, %v1468
        %v1501 = vmul.f32 %v1434, %v1469
        %v1502 = vmul.f32 %v1436, %v1470
        %v1503 = vmul.f32 %v1438, %v1471
        %v1504 = vmul.f32 %v1472, 0.044715
        %v1505 = vmul.f32 %v1473, 0.044715
        %v1506 = vmul.f32 %v1474, 0.044715
        %v1507 = vmul.f32 %v1475, 0.044715
        %v1508 = vmul.f32 %v1476, 0.044715
        %v1509 = vmul.f32 %v1477, 0.044715
        %v1510 = vmul.f32 %v1478, 0.044715
        %v1511 = vmul.f32 %v1479, 0.044715
        %v1512 = vmul.f32 %v1480, 0.044715
        %v1513 = vmul.f32 %v1481, 0.044715
        %v1514 = vmul.f32 %v1482, 0.044715
        %v1515 = vmul.f32 %v1483, 0.044715
        %v1516 = vmul.f32 %v1484, 0.044715
        %v1517 = vmul.f32 %v1485, 0.044715
        %v1518 = vmul.f32 %v1486, 0.044715
        %v1519 = vmul.f32 %v1487, 0.044715
        %v1520 = vmul.f32 %v1488, 0.044715
        %v1521 = vmul.f32 %v1489, 0.044715
        %v1522 = vmul.f32 %v1490, 0.044715
        %v1523 = vmul.f32 %v1491, 0.044715
        %v1524 = vmul.f32 %v1492, 0.044715
        %v1525 = vmul.f32 %v1493, 0.044715
        %v1526 = vmul.f32 %v1494, 0.044715
        %v1527 = vmul.f32 %v1495, 0.044715
        %v1528 = vmul.f32 %v1496, 0.044715
        %v1529 = vmul.f32 %v1497, 0.044715
        %v1530 = vmul.f32 %v1498, 0.044715
        %v1531 = vmul.f32 %v1499, 0.044715
        %v1532 = vmul.f32 %v1500, 0.044715
        %v1533 = vmul.f32 %v1501, 0.044715
        %v1534 = vmul.f32 %v1502, 0.044715
        %v1535 = vmul.f32 %v1503, 0.044715
        %v1536 = vadd.f32 %v1362, %v1504
        %v1537 = vadd.f32 %v1364, %v1505
        %v1538 = vadd.f32 %v1366, %v1506
        %v1539 = vadd.f32 %v1368, %v1507
        %v1540 = vadd.f32 %v1372, %v1508
        %v1541 = vadd.f32 %v1374, %v1509
        %v1542 = vadd.f32 %v1376, %v1510
        %v1543 = vadd.f32 %v1378, %v1511
        %v1544 = vadd.f32 %v1382, %v1512
        %v1545 = vadd.f32 %v1384, %v1513
        %v1546 = vadd.f32 %v1386, %v1514
        %v1547 = vadd.f32 %v1388, %v1515
        %v1548 = vadd.f32 %v1392, %v1516
        %v1549 = vadd.f32 %v1394, %v1517
        %v1550 = vadd.f32 %v1396, %v1518
        %v1551 = vadd.f32 %v1398, %v1519
        %v1552 = vadd.f32 %v1402, %v1520
        %v1553 = vadd.f32 %v1404, %v1521
        %v1554 = vadd.f32 %v1406, %v1522
        %v1555 = vadd.f32 %v1408, %v1523
        %v1556 = vadd.f32 %v1412, %v1524
        %v1557 = vadd.f32 %v1414, %v1525
        %v1558 = vadd.f32 %v1416, %v1526
        %v1559 = vadd.f32 %v1418, %v1527
        %v1560 = vadd.f32 %v1422, %v1528
        %v1561 = vadd.f32 %v1424, %v1529
        %v1562 = vadd.f32 %v1426, %v1530
        %v1563 = vadd.f32 %v1428, %v1531
        %v1564 = vadd.f32 %v1432, %v1532
        %v1565 = vadd.f32 %v1434, %v1533
        %v1566 = vadd.f32 %v1436, %v1534
        %v1567 = vadd.f32 %v1438, %v1535
        %v1568 = vmul.f32 %v1536, 0.7978846
        %v1569 = vmul.f32 %v1537, 0.7978846
        %v1570 = vmul.f32 %v1538, 0.7978846
        %v1571 = vmul.f32 %v1539, 0.7978846
        %v1572 = vmul.f32 %v1540, 0.7978846
        %v1573 = vmul.f32 %v1541, 0.7978846
        %v1574 = vmul.f32 %v1542, 0.7978846
        %v1575 = vmul.f32 %v1543, 0.7978846
        %v1576 = vmul.f32 %v1544, 0.7978846
        %v1577 = vmul.f32 %v1545, 0.7978846
        %v1578 = vmul.f32 %v1546, 0.7978846
        %v1579 = vmul.f32 %v1547, 0.7978846
        %v1580 = vmul.f32 %v1548, 0.7978846
        %v1581 = vmul.f32 %v1549, 0.7978846
        %v1582 = vmul.f32 %v1550, 0.7978846
        %v1583 = vmul.f32 %v1551, 0.7978846
        %v1584 = vmul.f32 %v1552, 0.7978846
        %v1585 = vmul.f32 %v1553, 0.7978846
        %v1586 = vmul.f32 %v1554, 0.7978846
        %v1587 = vmul.f32 %v1555, 0.7978846
        %v1588 = vmul.f32 %v1556, 0.7978846
        %v1589 = vmul.f32 %v1557, 0.7978846
        %v1590 = vmul.f32 %v1558, 0.7978846
        %v1591 = vmul.f32 %v1559, 0.7978846
        %v1592 = vmul.f32 %v1560, 0.7978846
        %v1593 = vmul.f32 %v1561, 0.7978846
        %v1594 = vmul.f32 %v1562, 0.7978846
        %v1595 = vmul.f32 %v1563, 0.7978846
        %v1596 = vmul.f32 %v1564, 0.7978846
        %v1597 = vmul.f32 %v1565, 0.7978846
        %v1598 = vmul.f32 %v1566, 0.7978846
        %v1599 = vmul.f32 %v1567, 0.7978846
        %v1600 = vtanh.pop %v1568
        %v1601 = vtanh.pop %v1569
        %v1602 = vtanh.pop %v1570
        %v1603 = vtanh.pop %v1571
        %v1604 = vtanh.pop %v1572
        %v1605 = vtanh.pop %v1573
        %v1606 = vtanh.pop %v1574
        %v1607 = vtanh.pop %v1575
        %v1608 = vtanh.pop %v1576
        %v1609 = vtanh.pop %v1577
        %v1610 = vtanh.pop %v1578
        %v1611 = vtanh.pop %v1579
        %v1612 = vtanh.pop %v1580
        %v1613 = vtanh.pop %v1581
        %v1614 = vtanh.pop %v1582
        %v1615 = vtanh.pop %v1583
        %v1616 = vtanh.pop %v1584
        %v1617 = vtanh.pop %v1585
        %v1618 = vtanh.pop %v1586
        %v1619 = vtanh.pop %v1587
        %v1620 = vtanh.pop %v1588
        %v1621 = vtanh.pop %v1589
        %v1622 = vtanh.pop %v1590
        %v1623 = vtanh.pop %v1591
        %v1624 = vtanh.pop %v1592
        %v1625 = vtanh.pop %v1593
        %v1626 = vtanh.pop %v1594
        %v1627 = vtanh.pop %v1595
        %v1628 = vtanh.pop %v1596
        %v1629 = vtanh.pop %v1597
        %v1630 = vtanh.pop %v1598
        %v1631 = vtanh.pop %v1599
        %v1632 = vadd.f32 %v1600, 1.0
        %v1633 = vadd.f32 %v1601, 1.0
        %v1634 = vadd.f32 %v1602, 1.0
        %v1635 = vadd.f32 %v1603, 1.0
        %v1636 = vadd.f32 %v1604, 1.0
        %v1637 = vadd.f32 %v1605, 1.0
        %v1638 = vadd.f32 %v1606, 1.0
        %v1639 = vadd.f32 %v1607, 1.0
        %v1640 = vadd.f32 %v1608, 1.0
        %v1641 = vadd.f32 %v1609, 1.0
        %v1642 = vadd.f32 %v1610, 1.0
        %v1643 = vadd.f32 %v1611, 1.0
        %v1644 = vadd.f32 %v1612, 1.0
        %v1645 = vadd.f32 %v1613, 1.0
        %v1646 = vadd.f32 %v1614, 1.0
        %v1647 = vadd.f32 %v1615, 1.0
        %v1648 = vadd.f32 %v1616, 1.0
        %v1649 = vadd.f32 %v1617, 1.0
        %v1650 = vadd.f32 %v1618, 1.0
        %v1651 = vadd.f32 %v1619, 1.0
        %v1652 = vadd.f32 %v1620, 1.0
        %v1653 = vadd.f32 %v1621, 1.0
        %v1654 = vadd.f32 %v1622, 1.0
        %v1655 = vadd.f32 %v1623, 1.0
        %v1656 = vadd.f32 %v1624, 1.0
        %v1657 = vadd.f32 %v1625, 1.0
        %v1658 = vadd.f32 %v1626, 1.0
        %v1659 = vadd.f32 %v1627, 1.0
        %v1660 = vadd.f32 %v1628, 1.0
        %v1661 = vadd.f32 %v1629, 1.0
        %v1662 = vadd.f32 %v1630, 1.0
        %v1663 = vadd.f32 %v1631, 1.0
        %v1664 = vmul.f32 %v1632, 0.5
        %v1665 = vmul.f32 %v1633, 0.5
        %v1666 = vmul.f32 %v1634, 0.5
        %v1667 = vmul.f32 %v1635, 0.5
        %v1668 = vmul.f32 %v1636, 0.5
        %v1669 = vmul.f32 %v1637, 0.5
        %v1670 = vmul.f32 %v1638, 0.5
        %v1671 = vmul.f32 %v1639, 0.5
        %v1672 = vmul.f32 %v1640, 0.5
        %v1673 = vmul.f32 %v1641, 0.5
        %v1674 = vmul.f32 %v1642, 0.5
        %v1675 = vmul.f32 %v1643, 0.5
        %v1676 = vmul.f32 %v1644, 0.5
        %v1677 = vmul.f32 %v1645, 0.5
        %v1678 = vmul.f32 %v1646, 0.5
        %v1679 = vmul.f32 %v1647, 0.5
        %v1680 = vmul.f32 %v1648, 0.5
        %v1681 = vmul.f32 %v1649, 0.5
        %v1682 = vmul.f32 %v1650, 0.5
        %v1683 = vmul.f32 %v1651, 0.5
        %v1684 = vmul.f32 %v1652, 0.5
        %v1685 = vmul.f32 %v1653, 0.5
        %v1686 = vmul.f32 %v1654, 0.5
        %v1687 = vmul.f32 %v1655, 0.5
        %v1688 = vmul.f32 %v1656, 0.5
        %v1689 = vmul.f32 %v1657, 0.5
        %v1690 = vmul.f32 %v1658, 0.5
        %v1691 = vmul.f32 %v1659, 0.5
        %v1692 = vmul.f32 %v1660, 0.5
        %v1693 = vmul.f32 %v1661, 0.5
        %v1694 = vmul.f32 %v1662, 0.5
        %v1695 = vmul.f32 %v1663, 0.5
        %v1696 = vmul.f32 %v1362, %v1664
        %v1697 = vmul.f32 %v1364, %v1665
        %v1698 = vmul.f32 %v1366, %v1666
        %v1699 = vmul.f32 %v1368, %v1667
        %v1700 = vmul.f32 %v1372, %v1668
        %v1701 = vmul.f32 %v1374, %v1669
        %v1702 = vmul.f32 %v1376, %v1670
        %v1703 = vmul.f32 %v1378, %v1671
        %v1704 = vmul.f32 %v1382, %v1672
        %v1705 = vmul.f32 %v1384, %v1673
        %v1706 = vmul.f32 %v1386, %v1674
        %v1707 = vmul.f32 %v1388, %v1675
        %v1708 = vmul.f32 %v1392, %v1676
        %v1709 = vmul.f32 %v1394, %v1677
        %v1710 = vmul.f32 %v1396, %v1678
        %v1711 = vmul.f32 %v1398, %v1679
        %v1712 = vmul.f32 %v1402, %v1680
        %v1713 = vmul.f32 %v1404, %v1681
        %v1714 = vmul.f32 %v1406, %v1682
        %v1715 = vmul.f32 %v1408, %v1683
        %v1716 = vmul.f32 %v1412, %v1684
        %v1717 = vmul.f32 %v1414, %v1685
        %v1718 = vmul.f32 %v1416, %v1686
        %v1719 = vmul.f32 %v1418, %v1687
        %v1720 = vmul.f32 %v1422, %v1688
        %v1721 = vmul.f32 %v1424, %v1689
        %v1722 = vmul.f32 %v1426, %v1690
        %v1723 = vmul.f32 %v1428, %v1691
        %v1724 = vmul.f32 %v1432, %v1692
        %v1725 = vmul.f32 %v1434, %v1693
        %v1726 = vmul.f32 %v1436, %v1694
        %v1727 = vmul.f32 %v1438, %v1695
        %v1728 = vpack.c.bf16 %v1698, %v1696
        %v1729 = vpack.c.bf16 %v1699, %v1697
        %v1730 = vpack.c.bf16 %v1702, %v1700
        %v1731 = vpack.c.bf16 %v1703, %v1701
        %v1732 = vpack.c.bf16 %v1706, %v1704
        %v1733 = vpack.c.bf16 %v1707, %v1705
        %v1734 = vpack.c.bf16 %v1710, %v1708
        %v1735 = vpack.c.bf16 %v1711, %v1709
        %v1736 = vpack.c.bf16 %v1714, %v1712
        %v1737 = vpack.c.bf16 %v1715, %v1713
        %v1738 = vpack.c.bf16 %v1718, %v1716
        %v1739 = vpack.c.bf16 %v1719, %v1717
        %v1740 = vpack.c.bf16 %v1722, %v1720
        %v1741 = vpack.c.bf16 %v1723, %v1721
        %v1742 = vpack.c.bf16 %v1726, %v1724
        %v1743 = vpack.c.bf16 %v1727, %v1725
        %v1744 = vld [vmem:[#allocation2] sm:$0xff]
        %v1745 = vld [vmem:[#allocation2 + $0x8] sm:$0xff]
        %v1746 = vld [vmem:[#allocation2 + $0x10] sm:$0xff]
        %v1747 = vld [vmem:[#allocation2 + $0x18] sm:$0xff]
        %v1748 = vld [vmem:[#allocation2 + $0x20] sm:$0xff]
        %v1749 = vld [vmem:[#allocation2 + $0x28] sm:$0xff]
        %v1750 = vld [vmem:[#allocation2 + $0x30] sm:$0xff]
        %v1751 = vld [vmem:[#allocation2 + $0x38] sm:$0xff]
        %v1752 = vld [vmem:[#allocation2 + $0x40] sm:$0xff]
        %v1753 = vld [vmem:[#allocation2 + $0x48] sm:$0xff]
        %v1754 = vld [vmem:[#allocation2 + $0x50] sm:$0xff]
        %v1755 = vld [vmem:[#allocation2 + $0x58] sm:$0xff]
        %v1756 = vld [vmem:[#allocation2 + $0x60] sm:$0xff]
        %v1757 = vld [vmem:[#allocation2 + $0x68] sm:$0xff]
        %v1758 = vld [vmem:[#allocation2 + $0x70] sm:$0xff]
        %v1759 = vld [vmem:[#allocation2 + $0x78] sm:$0xff]
        %v1760 = vld [vmem:[#allocation2 + $0x80] sm:$0xff]
        %v1761 = vld [vmem:[#allocation2 + $0x88] sm:$0xff]
        %v1762 = vld [vmem:[#allocation2 + $0x90] sm:$0xff]
        %v1763 = vld [vmem:[#allocation2 + $0x98] sm:$0xff]
        %v1764 = vld [vmem:[#allocation2 + $0xa0] sm:$0xff]
        %v1765 = vld [vmem:[#allocation2 + $0xa8] sm:$0xff]
        %v1766 = vld [vmem:[#allocation2 + $0xb0] sm:$0xff]
        %v1767 = vld [vmem:[#allocation2 + $0xb8] sm:$0xff]
        %v1768 = vld [vmem:[#allocation2 + $0xc0] sm:$0xff]
        %v1769 = vld [vmem:[#allocation2 + $0xc8] sm:$0xff]
        %v1770 = vld [vmem:[#allocation2 + $0xd0] sm:$0xff]
        %v1771 = vld [vmem:[#allocation2 + $0xd8] sm:$0xff]
        %v1772 = vld [vmem:[#allocation2 + $0xe0] sm:$0xff]
        %v1773 = vld [vmem:[#allocation2 + $0xe8] sm:$0xff]
        %v1774 = vld [vmem:[#allocation2 + $0xf0] sm:$0xff]
        %v1775 = vld [vmem:[#allocation2 + $0xf8] sm:$0xff]
        %v1776 = vld [vmem:[#allocation2 + $0x100] sm:$0xff]
        %v1777 = vld [vmem:[#allocation2 + $0x108] sm:$0xff]
        %v1778 = vld [vmem:[#allocation2 + $0x110] sm:$0xff]
        %v1779 = vld [vmem:[#allocation2 + $0x118] sm:$0xff]
        %v1780 = vld [vmem:[#allocation2 + $0x120] sm:$0xff]
        %v1781 = vld [vmem:[#allocation2 + $0x128] sm:$0xff]
        %v1782 = vld [vmem:[#allocation2 + $0x130] sm:$0xff]
        %v1783 = vld [vmem:[#allocation2 + $0x138] sm:$0xff]
        %v1784 = vld [vmem:[#allocation2 + $0x140] sm:$0xff]
        %v1785 = vld [vmem:[#allocation2 + $0x148] sm:$0xff]
        %v1786 = vld [vmem:[#allocation2 + $0x150] sm:$0xff]
        %v1787 = vld [vmem:[#allocation2 + $0x158] sm:$0xff]
        %v1788 = vld [vmem:[#allocation2 + $0x160] sm:$0xff]
        %v1789 = vld [vmem:[#allocation2 + $0x168] sm:$0xff]
        %v1790 = vld [vmem:[#allocation2 + $0x170] sm:$0xff]
        %v1791 = vld [vmem:[#allocation2 + $0x178] sm:$0xff]
        %v1792 = vld [vmem:[%s422] sm:$0xff]
        %v1793 = vld [vmem:[%s422 + $0x8] sm:$0xf]
        %v1794 = vld [vmem:[%s422 + $0xc] sm:$0xff]
        %v1795 = vld [vmem:[%s422 + $0x14] sm:$0xf]
        %v1796 = vld [vmem:[%s422 + $0x18] sm:$0xff]
        %v1797 = vld [vmem:[%s422 + $0x20] sm:$0xf]
        %v1798 = vld [vmem:[%s422 + $0x24] sm:$0xff]
        %v1799 = vld [vmem:[%s422 + $0x2c] sm:$0xf]
        %v1800 = vld [vmem:[%s422 + $0x30] sm:$0xff]
        %v1801 = vld [vmem:[%s422 + $0x38] sm:$0xf]
        %v1802 = vld [vmem:[%s422 + $0x3c] sm:$0xff]
        %v1803 = vld [vmem:[%s422 + $0x44] sm:$0xf]
        %v1804 = vld [vmem:[%s422 + $0x48] sm:$0xff]
        %v1805 = vld [vmem:[%s422 + $0x50] sm:$0xf]
        %v1806 = vld [vmem:[%s422 + $0x54] sm:$0xff]
        %v1807 = vld [vmem:[%s422 + $0x5c] sm:$0xf]
        %v1808 = vld [vmem:[%s422 + $0x60] sm:$0xff]
        %v1809 = vld [vmem:[%s422 + $0x68] sm:$0xf]
        %v1810 = vld [vmem:[%s422 + $0x6c] sm:$0xff]
        %v1811 = vld [vmem:[%s422 + $0x74] sm:$0xf]
        %v1812 = vld [vmem:[%s422 + $0x78] sm:$0xff]
        %v1813 = vld [vmem:[%s422 + $0x80] sm:$0xf]
        %v1814 = vld [vmem:[%s422 + $0x84] sm:$0xff]
        %v1815 = vld [vmem:[%s422 + $0x8c] sm:$0xf]
        %v1816 = vld [vmem:[%s422 + $0x90] sm:$0xff]
        %v1817 = vld [vmem:[%s422 + $0x98] sm:$0xf]
        %v1818 = vld [vmem:[%s422 + $0x9c] sm:$0xff]
        %v1819 = vld [vmem:[%s422 + $0xa4] sm:$0xf]
        %v1820 = vld [vmem:[%s422 + $0xa8] sm:$0xff]
        %v1821 = vld [vmem:[%s422 + $0xb0] sm:$0xf]
        %v1822 = vld [vmem:[%s422 + $0xb4] sm:$0xff]
        %v1823 = vld [vmem:[%s422 + $0xbc] sm:$0xf]
        %v1824 = vld [vmem:[%s422 + $0xc0] sm:$0xff]
        %v1825 = vld [vmem:[%s422 + $0xc8] sm:$0xf]
        %v1826 = vld [vmem:[%s422 + $0xcc] sm:$0xff]
        %v1827 = vld [vmem:[%s422 + $0xd4] sm:$0xf]
        %v1828 = vld [vmem:[%s422 + $0xd8] sm:$0xff]
        %v1829 = vld [vmem:[%s422 + $0xe0] sm:$0xf]
        %v1830 = vld [vmem:[%s422 + $0xe4] sm:$0xff]
        %v1831 = vld [vmem:[%s422 + $0xec] sm:$0xf]
        %v1832 = vld [vmem:[%s422 + $0xf0] sm:$0xff]
        %v1833 = vld [vmem:[%s422 + $0xf8] sm:$0xf]
        %v1834 = vld [vmem:[%s422 + $0xfc] sm:$0xff]
        %v1835 = vld [vmem:[%s422 + $0x104] sm:$0xf]
        %v1836 = vld [vmem:[%s422 + $0x108] sm:$0xff]
        %v1837 = vld [vmem:[%s422 + $0x110] sm:$0xf]
        %v1838 = vld [vmem:[%s422 + $0x114] sm:$0xff]
        %v1839 = vld [vmem:[%s422 + $0x11c] sm:$0xf]
        %v1840 = vld [vmem:[%s422 + $0x120] sm:$0xff]
        %v1841 = vld [vmem:[%s422 + $0x128] sm:$0xf]
        %v1842 = vld [vmem:[%s422 + $0x12c] sm:$0xff]
        %v1843 = vld [vmem:[%s422 + $0x134] sm:$0xf]
        %v1844 = vld [vmem:[%s422 + $0x138] sm:$0xff]
        %v1845 = vld [vmem:[%s422 + $0x140] sm:$0xf]
        %v1846 = vld [vmem:[%s422 + $0x144] sm:$0xff]
        %v1847 = vld [vmem:[%s422 + $0x14c] sm:$0xf]
        %v1848 = vld [vmem:[%s422 + $0x150] sm:$0xff]
        %v1849 = vld [vmem:[%s422 + $0x158] sm:$0xf]
        %v1850 = vld [vmem:[%s422 + $0x15c] sm:$0xff]
        %v1851 = vld [vmem:[%s422 + $0x164] sm:$0xf]
        %v1852 = vld [vmem:[%s422 + $0x168] sm:$0xff]
        %v1853 = vld [vmem:[%s422 + $0x170] sm:$0xf]
        %v1854 = vld [vmem:[%s422 + $0x174] sm:$0xff]
        %v1855 = vld [vmem:[%s422 + $0x17c] sm:$0xf]
        %v1920 = vunpack.c.l.b16 %v1792
        %v1921 = vunpack.c.h.b16 %v1792
        %v1922 = vunpack.c.l.b16 %v1793
        %v1923 = vunpack.c.l.b16 %v1794
        %v1924 = vunpack.c.h.b16 %v1794
        %v1925 = vunpack.c.l.b16 %v1795
        %v1926 = vunpack.c.l.b16 %v1796
        %v1927 = vunpack.c.h.b16 %v1796
        %v1928 = vunpack.c.l.b16 %v1797
        %v1929 = vunpack.c.l.b16 %v1798
        %v1930 = vunpack.c.h.b16 %v1798
        %v1931 = vunpack.c.l.b16 %v1799
        %v1932 = vunpack.c.l.b16 %v1800
        %v1933 = vunpack.c.h.b16 %v1800
        %v1934 = vunpack.c.l.b16 %v1801
        %v1935 = vunpack.c.l.b16 %v1802
        %v1936 = vunpack.c.h.b16 %v1802
        %v1937 = vunpack.c.l.b16 %v1803
        %v1938 = vunpack.c.l.b16 %v1804
        %v1939 = vunpack.c.h.b16 %v1804
        %v1940 = vunpack.c.l.b16 %v1805
        %v1941 = vunpack.c.l.b16 %v1806
        %v1942 = vunpack.c.h.b16 %v1806
        %v1943 = vunpack.c.l.b16 %v1807
        %v1944 = vunpack.c.l.b16 %v1808
        %v1945 = vunpack.c.h.b16 %v1808
        %v1946 = vunpack.c.l.b16 %v1809
        %v1947 = vunpack.c.l.b16 %v1810
        %v1948 = vunpack.c.h.b16 %v1810
        %v1949 = vunpack.c.l.b16 %v1811
        %v1950 = vunpack.c.l.b16 %v1812
        %v1951 = vunpack.c.h.b16 %v1812
        %v1952 = vunpack.c.l.b16 %v1813
        %v1953 = vunpack.c.l.b16 %v1814
        %v1954 = vunpack.c.h.b16 %v1814
        %v1955 = vunpack.c.l.b16 %v1815
        %v1956 = vunpack.c.l.b16 %v1816
        %v1957 = vunpack.c.h.b16 %v1816
        %v1958 = vunpack.c.l.b16 %v1817
        %v1959 = vunpack.c.l.b16 %v1818
        %v1960 = vunpack.c.h.b16 %v1818
        %v1961 = vunpack.c.l.b16 %v1819
        %v1962 = vunpack.c.l.b16 %v1820
        %v1963 = vunpack.c.h.b16 %v1820
        %v1964 = vunpack.c.l.b16 %v1821
        %v1965 = vunpack.c.l.b16 %v1822
        %v1966 = vunpack.c.h.b16 %v1822
        %v1967 = vunpack.c.l.b16 %v1823
        %v1968 = vunpack.c.l.b16 %v1824
        %v1969 = vunpack.c.h.b16 %v1824
        %v1970 = vunpack.c.l.b16 %v1825
        %v1971 = vunpack.c.l.b16 %v1826
        %v1972 = vunpack.c.h.b16 %v1826
        %v1973 = vunpack.c.l.b16 %v1827
        %v1974 = vunpack.c.l.b16 %v1828
        %v1975 = vunpack.c.h.b16 %v1828
        %v1976 = vunpack.c.l.b16 %v1829
        %v1977 = vunpack.c.l.b16 %v1830
        %v1978 = vunpack.c.h.b16 %v1830
        %v1979 = vunpack.c.l.b16 %v1831
        %v1980 = vunpack.c.l.b16 %v1832
        %v1981 = vunpack.c.h.b16 %v1832
        %v1982 = vunpack.c.l.b16 %v1833
        %v1983 = vunpack.c.l.b16 %v1834
        %v1984 = vunpack.c.h.b16 %v1834
        %v1985 = vunpack.c.l.b16 %v1835
        %v1986 = vunpack.c.l.b16 %v1836
        %v1987 = vunpack.c.h.b16 %v1836
        %v1988 = vunpack.c.l.b16 %v1837
        %v1989 = vunpack.c.l.b16 %v1838
        %v1990 = vunpack.c.h.b16 %v1838
        %v1991 = vunpack.c.l.b16 %v1839
        %v1992 = vunpack.c.l.b16 %v1840
        %v1993 = vunpack.c.h.b16 %v1840
        %v1994 = vunpack.c.l.b16 %v1841
        %v1995 = vunpack.c.l.b16 %v1842
        %v1996 = vunpack.c.h.b16 %v1842
        %v1997 = vunpack.c.l.b16 %v1843
        %v1998 = vunpack.c.l.b16 %v1844
        %v1999 = vunpack.c.h.b16 %v1844
        %v2000 = vunpack.c.l.b16 %v1845
        %v2001 = vunpack.c.l.b16 %v1846
        %v2002 = vunpack.c.h.b16 %v1846
        %v2003 = vunpack.c.l.b16 %v1847
        %v2004 = vunpack.c.l.b16 %v1848
        %v2005 = vunpack.c.h.b16 %v1848
        %v2006 = vunpack.c.l.b16 %v1849
        %v2007 = vunpack.c.l.b16 %v1850
        %v2008 = vunpack.c.h.b16 %v1850
        %v2009 = vunpack.c.l.b16 %v1851
        %v2010 = vunpack.c.l.b16 %v1852
        %v2011 = vunpack.c.h.b16 %v1852
        %v2012 = vunpack.c.l.b16 %v1853
        %v2013 = vunpack.c.l.b16 %v1854
        %v2014 = vunpack.c.h.b16 %v1854
        %v2015 = vunpack.c.l.b16 %v1855
        %v2016 = vpack.c.b16 %v1923, %v1920
        %v2017 = vpack.c.b16 %v1924, %v1921
        %v2018 = vpack.c.b16 %v1925, %v1922
        %v2019 = vpack.c.b16 %v1929, %v1926
        %v2020 = vpack.c.b16 %v1930, %v1927
        %v2021 = vpack.c.b16 %v1931, %v1928
        %v2022 = vpack.c.b16 %v1935, %v1932
        %v2023 = vpack.c.b16 %v1936, %v1933
        %v2024 = vpack.c.b16 %v1937, %v1934
        %v2025 = vpack.c.b16 %v1941, %v1938
        %v2026 = vpack.c.b16 %v1942, %v1939
        %v2027 = vpack.c.b16 %v1943, %v1940
        %v2028 = vpack.c.b16 %v1947, %v1944
        %v2029 = vpack.c.b16 %v1948, %v1945
        %v2030 = vpack.c.b16 %v1949, %v1946
        %v2031 = vpack.c.b16 %v1953, %v1950
        %v2032 = vpack.c.b16 %v1954, %v1951
        %v2033 = vpack.c.b16 %v1955, %v1952
        %v2034 = vpack.c.b16 %v1959, %v1956
        %v2035 = vpack.c.b16 %v1960, %v1957
        %v2036 = vpack.c.b16 %v1961, %v1958
        %v2037 = vpack.c.b16 %v1965, %v1962
        %v2038 = vpack.c.b16 %v1966, %v1963
        %v2039 = vpack.c.b16 %v1967, %v1964
        %v2040 = vpack.c.b16 %v1971, %v1968
        %v2041 = vpack.c.b16 %v1972, %v1969
        %v2042 = vpack.c.b16 %v1973, %v1970
        %v2043 = vpack.c.b16 %v1977, %v1974
        %v2044 = vpack.c.b16 %v1978, %v1975
        %v2045 = vpack.c.b16 %v1979, %v1976
        %v2046 = vpack.c.b16 %v1983, %v1980
        %v2047 = vpack.c.b16 %v1984, %v1981
        %v2048 = vpack.c.b16 %v1985, %v1982
        %v2049 = vpack.c.b16 %v1989, %v1986
        %v2050 = vpack.c.b16 %v1990, %v1987
        %v2051 = vpack.c.b16 %v1991, %v1988
        %v2052 = vpack.c.b16 %v1995, %v1992
        %v2053 = vpack.c.b16 %v1996, %v1993
        %v2054 = vpack.c.b16 %v1997, %v1994
        %v2055 = vpack.c.b16 %v2001, %v1998
        %v2056 = vpack.c.b16 %v2002, %v1999
        %v2057 = vpack.c.b16 %v2003, %v2000
        %v2058 = vpack.c.b16 %v2007, %v2004
        %v2059 = vpack.c.b16 %v2008, %v2005
        %v2060 = vpack.c.b16 %v2009, %v2006
        %v2061 = vpack.c.b16 %v2013, %v2010
        %v2062 = vpack.c.b16 %v2014, %v2011
        %v2063 = vpack.c.b16 %v2015, %v2012
        %2112 = vmatprep.subr.bf16.mxu0 %v2017
        %2113 = vmatpush1.bf16.msra.mxu0 %v2016
        %2114 = vmatprep.subr.bf16.mxu0 %v2020
        %2115 = vmatpush1.bf16.msra.mxu0 %v2019
        %2116 = vmatprep.subr.bf16.mxu0 %v2023
        %2117 = vmatpush1.bf16.msra.mxu0 %v2022
        %2118 = vmatprep.subr.bf16.mxu0 %v2026
        %2119 = vmatpush1.bf16.msra.mxu0 %v2025
        %2120 = vmatprep.subr.bf16.mxu0 %v2029
        %2121 = vmatpush1.bf16.msra.mxu0 %v2028
        %2122 = vmatprep.subr.bf16.mxu0 %v2032
        %2123 = vmatpush1.bf16.msra.mxu0 %v2031
        %2124 = vmatprep.subr.bf16.mxu0 %v2035
        %2125 = vmatpush1.bf16.msra.mxu0 %v2034
        %2126 = vmatprep.subr.bf16.mxu0 %v2038
        %2127 = vmatpush1.bf16.msra.mxu0 %v2037
        %2128 = vmatprep.subr.bf16.mxu0 %v2041
        %2129 = vmatpush1.bf16.msra.mxu0 %v2040
        %2130 = vmatprep.subr.bf16.mxu0 %v2044
        %2131 = vmatpush1.bf16.msra.mxu0 %v2043
        %2132 = vmatprep.subr.bf16.mxu0 %v2047
        %2133 = vmatpush1.bf16.msra.mxu0 %v2046
        %2134 = vmatprep.subr.bf16.mxu0 %v2050
        %2135 = vmatpush1.bf16.msra.mxu0 %v2049
        %2136 = vmatprep.subr.bf16.mxu0 %v2053
        %2137 = vmatpush1.bf16.msra.mxu0 %v2052
        %2138 = vmatprep.subr.bf16.mxu0 %v2056
        %2139 = vmatpush1.bf16.msra.mxu0 %v2055
        %2140 = vmatprep.subr.bf16.mxu0 %v2059
        %2141 = vmatpush1.bf16.msra.mxu0 %v2058
        %2142 = vmatprep.subr.bf16.mxu0 %v2062
        %2143 = vmatpush1.bf16.msra.mxu0 %v2061
        %2144 = vmatprep.mubr.bf16.mxu0 %v1729
        %2145 = vmatmul.mubr.bf16.gmra.mrb[0].mxu0 %v1728
        %v2146 = vpop.f32.mrb[0].mxu0
        %v2147 = vadd.f32 0.0, %v2146
        %v2148 = vpop.f32.mrb[0].mxu0
        %v2149 = vadd.f32 0.0, %v2148
        %v2150 = vpop.f32.mrb[0].mxu0
        %v2151 = vadd.f32 0.0, %v2150
        %v2152 = vpop.f32.mrb[0].mxu0
        %v2153 = vadd.f32 0.0, %v2152
        %2154 = vmatprep.mubr.bf16.mxu0 %v1731
        %2155 = vmatmul.mubr.bf16.gmra.mrb[0].mxu0 %v1730
        %v2156 = vpop.f32.mrb[0].mxu0
        %v2157 = vadd.f32 0.0, %v2156
        %v2158 = vpop.f32.mrb[0].mxu0
        %v2159 = vadd.f32 0.0, %v2158
        %v2160 = vpop.f32.mrb[0].mxu0
        %v2161 = vadd.f32 0.0, %v2160
        %v2162 = vpop.f32.mrb[0].mxu0
        %v2163 = vadd.f32 0.0, %v2162
        %2164 = vmatprep.mubr.bf16.mxu0 %v1733
        %2165 = vmatmul.mubr.bf16.gmra.mrb[0].mxu0 %v1732
        %v2166 = vpop.f32.mrb[0].mxu0
        %v2167 = vadd.f32 0.0, %v2166
        %v2168 = vpop.f32.mrb[0].mxu0
        %v2169 = vadd.f32 0.0, %v2168
        %v2170 = vpop.f32.mrb[0].mxu0
        %v2171 = vadd.f32 0.0, %v2170
        %v2172 = vpop.f32.mrb[0].mxu0
        %v2173 = vadd.f32 0.0, %v2172
        %2174 = vmatprep.mubr.bf16.mxu0 %v1735
        %2175 = vmatmul.mubr.bf16.gmra.mrb[0].mxu0 %v1734
        %v2176 = vpop.f32.mrb[0].mxu0
        %v2177 = vadd.f32 0.0, %v2176
        %v2178 = vpop.f32.mrb[0].mxu0
        %v2179 = vadd.f32 0.0, %v2178
        %v2180 = vpop.f32.mrb[0].mxu0
        %v2181 = vadd.f32 0.0, %v2180
        %v2182 = vpop.f32.mrb[0].mxu0
        %v2183 = vadd.f32 0.0, %v2182
        %2184 = vmatprep.mubr.bf16.mxu0 %v1737
        %2185 = vmatmul.mubr.bf16.gmra.mrb[0].mxu0 %v1736
        %v2186 = vpop.f32.mrb[0].mxu0
        %v2187 = vadd.f32 0.0, %v2186
        %v2188 = vpop.f32.mrb[0].mxu0
        %v2189 = vadd.f32 0.0, %v2188
        %v2190 = vpop.f32.mrb[0].mxu0
        %v2191 = vadd.f32 0.0, %v2190
        %v2192 = vpop.f32.mrb[0].mxu0
        %v2193 = vadd.f32 0.0, %v2192
        %2194 = vmatprep.mubr.bf16.mxu0 %v1739
        %2195 = vmatmul.mubr.bf16.gmra.mrb[0].mxu0 %v1738
        %v2196 = vpop.f32.mrb[0].mxu0
        %v2197 = vadd.f32 0.0, %v2196
        %v2198 = vpop.f32.mrb[0].mxu0
        %v2199 = vadd.f32 0.0, %v2198
        %v2200 = vpop.f32.mrb[0].mxu0
        %v2201 = vadd.f32 0.0, %v2200
        %v2202 = vpop.f32.mrb[0].mxu0
        %v2203 = vadd.f32 0.0, %v2202
        %2204 = vmatprep.mubr.bf16.mxu0 %v1741
        %2205 = vmatmul.mubr.bf16.gmra.mrb[0].mxu0 %v1740
        %v2206 = vpop.f32.mrb[0].mxu0
        %v2207 = vadd.f32 0.0, %v2206
        %v2208 = vpop.f32.mrb[0].mxu0
        %v2209 = vadd.f32 0.0, %v2208
        %v2210 = vpop.f32.mrb[0].mxu0
        %v2211 = vadd.f32 0.0, %v2210
        %v2212 = vpop.f32.mrb[0].mxu0
        %v2213 = vadd.f32 0.0, %v2212
        %2214 = vmatprep.mubr.bf16.mxu0 %v1743
        %2215 = vmatmul.mubr.bf16.gmra.mrb[0].mxu0 %v1742
        %v2216 = vpop.f32.mrb[0].mxu0
        %v2217 = vadd.f32 0.0, %v2216
        %v2218 = vpop.f32.mrb[0].mxu0
        %v2219 = vadd.f32 0.0, %v2218
        %v2220 = vpop.f32.mrb[0].mxu0
        %v2221 = vadd.f32 0.0, %v2220
        %v2222 = vpop.f32.mrb[0].mxu0
        %v2223 = vadd.f32 0.0, %v2222
        %2224 = vdwg.mxu0
        %2225 = vmatprep.subr.bf16.mxu0 0
        %2226 = vmatpush1.bf16.msra.mxu0 %v2018
        %2227 = vmatprep.subr.bf16.mxu0 0
        %2228 = vmatpush1.bf16.msra.mxu0 %v2021
        %2229 = vmatprep.subr.bf16.mxu0 0
        %2230 = vmatpush1.bf16.msra.mxu0 %v2024
        %2231 = vmatprep.subr.bf16.mxu0 0
        %2232 = vmatpush1.bf16.msra.mxu0 %v2027
        %2233 = vmatprep.subr.bf16.mxu0 0
        %2234 = vmatpush1.bf16.msra.mxu0 %v2030
        %2235 = vmatprep.subr.bf16.mxu0 0
        %2236 = vmatpush1.bf16.msra.mxu0 %v2033
        %2237 = vmatprep.subr.bf16.mxu0 0
        %2238 = vmatpush1.bf16.msra.mxu0 %v2036
        %2239 = vmatprep.subr.bf16.mxu0 0
        %2240 = vmatpush1.bf16.msra.mxu0 %v2039
        %2241 = vmatprep.subr.bf16.mxu0 0
        %2242 = vmatpush1.bf16.msra.mxu0 %v2042
        %2243 = vmatprep.subr.bf16.mxu0 0
        %2244 = vmatpush1.bf16.msra.mxu0 %v2045
        %2245 = vmatprep.subr.bf16.mxu0 0
        %2246 = vmatpush1.bf16.msra.mxu0 %v2048
        %2247 = vmatprep.subr.bf16.mxu0 0
        %2248 = vmatpush1.bf16.msra.mxu0 %v2051
        %2249 = vmatprep.subr.bf16.mxu0 0
        %2250 = vmatpush1.bf16.msra.mxu0 %v2054
        %2251 = vmatprep.subr.bf16.mxu0 0
        %2252 = vmatpush1.bf16.msra.mxu0 %v2057
        %2253 = vmatprep.subr.bf16.mxu0 0
        %2254 = vmatpush1.bf16.msra.mxu0 %v2060
        %2255 = vmatprep.subr.bf16.mxu0 0
        %2256 = vmatpush1.bf16.msra.mxu0 %v2063
        %2257 = vmatprep.mubr.bf16.mxu0 %v1729
        %2258 = vmatmul.mubr.bf16.gmra.mrb[0].mxu0 %v1728
        %v2259 = vpop.f32.mrb[0].mxu0
        %v2260 = vadd.f32 0.0, %v2259
        %v2261 = vpop.f32.mrb[0].mxu0
        %v2262 = vpop.f32.mrb[0].mxu0
        %v2263 = vadd.f32 0.0, %v2262
        %v2264 = vpop.f32.mrb[0].mxu0
        %2265 = vmatprep.mubr.bf16.mxu0 %v1731
        %2266 = vmatmul.mubr.bf16.gmra.mrb[0].mxu0 %v1730
        %v2267 = vpop.f32.mrb[0].mxu0
        %v2268 = vadd.f32 0.0, %v2267
        %v2269 = vpop.f32.mrb[0].mxu0
        %v2270 = vpop.f32.mrb[0].mxu0
        %v2271 = vadd.f32 0.0, %v2270
        %v2272 = vpop.f32.mrb[0].mxu0
        %2273 = vmatprep.mubr.bf16.mxu0 %v1733
        %2274 = vmatmul.mubr.bf16.gmra.mrb[0].mxu0 %v1732
        %v2275 = vpop.f32.mrb[0].mxu0
        %v2276 = vadd.f32 0.0, %v2275
        %v2277 = vpop.f32.mrb[0].mxu0
        %v2278 = vpop.f32.mrb[0].mxu0
        %v2279 = vadd.f32 0.0, %v2278
        %v2280 = vpop.f32.mrb[0].mxu0
        %2281 = vmatprep.mubr.bf16.mxu0 %v1735
        %2282 = vmatmul.mubr.bf16.gmra.mrb[0].mxu0 %v1734
        %v2283 = vpop.f32.mrb[0].mxu0
        %v2284 = vadd.f32 0.0, %v2283
        %v2285 = vpop.f32.mrb[0].mxu0
        %v2286 = vpop.f32.mrb[0].mxu0
        %v2287 = vadd.f32 0.0, %v2286
        %v2288 = vpop.f32.mrb[0].mxu0
        %2289 = vmatprep.mubr.bf16.mxu0 %v1737
        %2290 = vmatmul.mubr.bf16.gmra.mrb[0].mxu0 %v1736
        %v2291 = vpop.f32.mrb[0].mxu0
        %v2292 = vadd.f32 0.0, %v2291
        %v2293 = vpop.f32.mrb[0].mxu0
        %v2294 = vpop.f32.mrb[0].mxu0
        %v2295 = vadd.f32 0.0, %v2294
        %v2296 = vpop.f32.mrb[0].mxu0
        %2297 = vmatprep.mubr.bf16.mxu0 %v1739
        %2298 = vmatmul.mubr.bf16.gmra.mrb[0].mxu0 %v1738
        %v2299 = vpop.f32.mrb[0].mxu0
        %v2300 = vadd.f32 0.0, %v2299
        %v2301 = vpop.f32.mrb[0].mxu0
        %v2302 = vpop.f32.mrb[0].mxu0
        %v2303 = vadd.f32 0.0, %v2302
        %v2304 = vpop.f32.mrb[0].mxu0
        %2305 = vmatprep.mubr.bf16.mxu0 %v1741
        %2306 = vmatmul.mubr.bf16.gmra.mrb[0].mxu0 %v1740
        %v2307 = vpop.f32.mrb[0].mxu0
        %v2308 = vadd.f32 0.0, %v2307
        %v2309 = vpop.f32.mrb[0].mxu0
        %v2310 = vpop.f32.mrb[0].mxu0
        %v2311 = vadd.f32 0.0, %v2310
        %v2312 = vpop.f32.mrb[0].mxu0
        %2313 = vmatprep.mubr.bf16.mxu0 %v1743
        %2314 = vmatmul.mubr.bf16.gmra.mrb[0].mxu0 %v1742
        %v2315 = vpop.f32.mrb[0].mxu0
        %v2316 = vadd.f32 0.0, %v2315
        %v2317 = vpop.f32.mrb[0].mxu0
        %v2318 = vpop.f32.mrb[0].mxu0
        %v2319 = vadd.f32 0.0, %v2318
        %v2320 = vpop.f32.mrb[0].mxu0
        %2321 = vdwg.mxu0
        %v2322 = vadd.f32 %v1744, %v2147
        %v2323 = vadd.f32 %v1745, %v2149
        %v2324 = vadd.f32 %v1746, %v2260
        %v2325 = vadd.f32 %v1747, %v2151
        %v2326 = vadd.f32 %v1748, %v2153
        %v2327 = vadd.f32 %v1749, %v2263
        %v2328 = vadd.f32 %v1750, %v2157
        %v2329 = vadd.f32 %v1751, %v2159
        %v2330 = vadd.f32 %v1752, %v2268
        %v2331 = vadd.f32 %v1753, %v2161
        %v2332 = vadd.f32 %v1754, %v2163
        %v2333 = vadd.f32 %v1755, %v2271
        %v2334 = vadd.f32 %v1756, %v2167
        %v2335 = vadd.f32 %v1757, %v2169
        %v2336 = vadd.f32 %v1758, %v2276
        %v2337 = vadd.f32 %v1759, %v2171
        %v2338 = vadd.f32 %v1760, %v2173
        %v2339 = vadd.f32 %v1761, %v2279
        %v2340 = vadd.f32 %v1762, %v2177
        %v2341 = vadd.f32 %v1763, %v2179
        %v2342 = vadd.f32 %v1764, %v2284
        %v2343 = vadd.f32 %v1765, %v2181
        %v2344 = vadd.f32 %v1766, %v2183
        %v2345 = vadd.f32 %v1767, %v2287
        %v2346 = vadd.f32 %v1768, %v2187
        %v2347 = vadd.f32 %v1769, %v2189
        %v2348 = vadd.f32 %v1770, %v2292
        %v2349 = vadd.f32 %v1771, %v2191
        %v2350 = vadd.f32 %v1772, %v2193
        %v2351 = vadd.f32 %v1773, %v2295
        %v2352 = vadd.f32 %v1774, %v2197
        %v2353 = vadd.f32 %v1775, %v2199
        %v2354 = vadd.f32 %v1776, %v2300
        %v2355 = vadd.f32 %v1777, %v2201
        %v2356 = vadd.f32 %v1778, %v2203
        %v2357 = vadd.f32 %v1779, %v2303
        %v2358 = vadd.f32 %v1780, %v2207
        %v2359 = vadd.f32 %v1781, %v2209
        %v2360 = vadd.f32 %v1782, %v2308
        %v2361 = vadd.f32 %v1783, %v2211
        %v2362 = vadd.f32 %v1784, %v2213
        %v2363 = vadd.f32 %v1785, %v2311
        %v2364 = vadd.f32 %v1786, %v2217
        %v2365 = vadd.f32 %v1787, %v2219
        %v2366 = vadd.f32 %v1788, %v2316
        %v2367 = vadd.f32 %v1789, %v2221
        %v2368 = vadd.f32 %v1790, %v2223
        %v2369 = vadd.f32 %v1791, %v2319
        %2370 = vst [vmem:[#allocation2] sm:$0xff] %v2322
        %2371 = vst [vmem:[#allocation2 + $0x8] sm:$0xff] %v2323
        %2372 = vst [vmem:[#allocation2 + $0x10] sm:$0xff] %v2324
        %2373 = vst [vmem:[#allocation2 + $0x18] sm:$0xff] %v2325
        %2374 = vst [vmem:[#allocation2 + $0x20] sm:$0xff] %v2326
        %2375 = vst [vmem:[#allocation2 + $0x28] sm:$0xff] %v2327
        %2376 = vst [vmem:[#allocation2 + $0x30] sm:$0xff] %v2328
        %2377 = vst [vmem:[#allocation2 + $0x38] sm:$0xff] %v2329
        %2378 = vst [vmem:[#allocation2 + $0x40] sm:$0xff] %v2330
        %2379 = vst [vmem:[#allocation2 + $0x48] sm:$0xff] %v2331
        %2380 = vst [vmem:[#allocation2 + $0x50] sm:$0xff] %v2332
        %2381 = vst [vmem:[#allocation2 + $0x58] sm:$0xff] %v2333
        %2382 = vst [vmem:[#allocation2 + $0x60] sm:$0xff] %v2334
        %2383 = vst [vmem:[#allocation2 + $0x68] sm:$0xff] %v2335
        %2384 = vst [vmem:[#allocation2 + $0x70] sm:$0xff] %v2336
        %2385 = vst [vmem:[#allocation2 + $0x78] sm:$0xff] %v2337
        %2386 = vst [vmem:[#allocation2 + $0x80] sm:$0xff] %v2338
        %2387 = vst [vmem:[#allocation2 + $0x88] sm:$0xff] %v2339
        %2388 = vst [vmem:[#allocation2 + $0x90] sm:$0xff] %v2340
        %2389 = vst [vmem:[#allocation2 + $0x98] sm:$0xff] %v2341
        %2390 = vst [vmem:[#allocation2 + $0xa0] sm:$0xff] %v2342
        %2391 = vst [vmem:[#allocation2 + $0xa8] sm:$0xff] %v2343
        %2392 = vst [vmem:[#allocation2 + $0xb0] sm:$0xff] %v2344
        %2393 = vst [vmem:[#allocation2 + $0xb8] sm:$0xff] %v2345
        %2394 = vst [vmem:[#allocation2 + $0xc0] sm:$0xff] %v2346
        %2395 = vst [vmem:[#allocation2 + $0xc8] sm:$0xff] %v2347
        %2396 = vst [vmem:[#allocation2 + $0xd0] sm:$0xff] %v2348
        %2397 = vst [vmem:[#allocation2 + $0xd8] sm:$0xff] %v2349
        %2398 = vst [vmem:[#allocation2 + $0xe0] sm:$0xff] %v2350
        %2399 = vst [vmem:[#allocation2 + $0xe8] sm:$0xff] %v2351
        %2400 = vst [vmem:[#allocation2 + $0xf0] sm:$0xff] %v2352
        %2401 = vst [vmem:[#allocation2 + $0xf8] sm:$0xff] %v2353
        %2402 = vst [vmem:[#allocation2 + $0x100] sm:$0xff] %v2354
        %2403 = vst [vmem:[#allocation2 + $0x108] sm:$0xff] %v2355
        %2404 = vst [vmem:[#allocation2 + $0x110] sm:$0xff] %v2356
        %2405 = vst [vmem:[#allocation2 + $0x118] sm:$0xff] %v2357
        %2406 = vst [vmem:[#allocation2 + $0x120] sm:$0xff] %v2358
        %2407 = vst [vmem:[#allocation2 + $0x128] sm:$0xff] %v2359
        %2408 = vst [vmem:[#allocation2 + $0x130] sm:$0xff] %v2360
        %2409 = vst [vmem:[#allocation2 + $0x138] sm:$0xff] %v2361
        %2410 = vst [vmem:[#allocation2 + $0x140] sm:$0xff] %v2362
        %2411 = vst [vmem:[#allocation2 + $0x148] sm:$0xff] %v2363
        %2412 = vst [vmem:[#allocation2 + $0x150] sm:$0xff] %v2364
        %2413 = vst [vmem:[#allocation2 + $0x158] sm:$0xff] %v2365
        %2414 = vst [vmem:[#allocation2 + $0x160] sm:$0xff] %v2366
        %2415 = vst [vmem:[#allocation2 + $0x168] sm:$0xff] %v2367
        %2416 = vst [vmem:[#allocation2 + $0x170] sm:$0xff] %v2368
        %2417 = vst [vmem:[#allocation2 + $0x178] sm:$0xff] %v2369
        %p2418 = scmp.eq.s32.totalorder %s33, 1
        // Predicated region
        $region99: #{tpu_custom_call.1} parent=77 // pred_check
          %p2419 = pneg %p2418
        $region100: #{tpu_custom_call.1} parent=77 // pred_check_branch
          %2421 = sbr.rel (%p2419) target = $region102
        $region101: #{tpu_custom_call.1} parent=77 // pred_region
          %v2422 = vld [vmem:[#allocation2] sm:$0xff]
          %v2423 = vld [vmem:[#allocation2 + $0x8] sm:$0xff]
          %v2424 = vld [vmem:[#allocation2 + $0x10] sm:$0xff]
          %v2425 = vld [vmem:[#allocation2 + $0x18] sm:$0xff]
          %v2426 = vld [vmem:[#allocation2 + $0x20] sm:$0xff]
          %v2427 = vld [vmem:[#allocation2 + $0x28] sm:$0xff]
          %v2428 = vld [vmem:[#allocation2 + $0x30] sm:$0xff]
          %v2429 = vld [vmem:[#allocation2 + $0x38] sm:$0xff]
          %v2430 = vld [vmem:[#allocation2 + $0x40] sm:$0xff]
          %v2431 = vld [vmem:[#allocation2 + $0x48] sm:$0xff]
          %v2432 = vld [vmem:[#allocation2 + $0x50] sm:$0xff]
          %v2433 = vld [vmem:[#allocation2 + $0x58] sm:$0xff]
          %v2434 = vld [vmem:[#allocation2 + $0x60] sm:$0xff]
          %v2435 = vld [vmem:[#allocation2 + $0x68] sm:$0xff]
          %v2436 = vld [vmem:[#allocation2 + $0x70] sm:$0xff]
          %v2437 = vld [vmem:[#allocation2 + $0x78] sm:$0xff]
          %v2438 = vld [vmem:[#allocation2 + $0x80] sm:$0xff]
          %v2439 = vld [vmem:[#allocation2 + $0x88] sm:$0xff]
          %v2440 = vld [vmem:[#allocation2 + $0x90] sm:$0xff]
          %v2441 = vld [vmem:[#allocation2 + $0x98] sm:$0xff]
          %v2442 = vld [vmem:[#allocation2 + $0xa0] sm:$0xff]
          %v2443 = vld [vmem:[#allocation2 + $0xa8] sm:$0xff]
          %v2444 = vld [vmem:[#allocation2 + $0xb0] sm:$0xff]
          %v2445 = vld [vmem:[#allocation2 + $0xb8] sm:$0xff]
          %v2446 = vld [vmem:[#allocation2 + $0xc0] sm:$0xff]
          %v2447 = vld [vmem:[#allocation2 + $0xc8] sm:$0xff]
          %v2448 = vld [vmem:[#allocation2 + $0xd0] sm:$0xff]
          %v2449 = vld [vmem:[#allocation2 + $0xd8] sm:$0xff]
          %v2450 = vld [vmem:[#allocation2 + $0xe0] sm:$0xff]
          %v2451 = vld [vmem:[#allocation2 + $0xe8] sm:$0xff]
          %v2452 = vld [vmem:[#allocation2 + $0xf0] sm:$0xff]
          %v2453 = vld [vmem:[#allocation2 + $0xf8] sm:$0xff]
          %v2454 = vld [vmem:[#allocation2 + $0x100] sm:$0xff]
          %v2455 = vld [vmem:[#allocation2 + $0x108] sm:$0xff]
          %v2456 = vld [vmem:[#allocation2 + $0x110] sm:$0xff]
          %v2457 = vld [vmem:[#allocation2 + $0x118] sm:$0xff]
          %v2458 = vld [vmem:[#allocation2 + $0x120] sm:$0xff]
          %v2459 = vld [vmem:[#allocation2 + $0x128] sm:$0xff]
          %v2460 = vld [vmem:[#allocation2 + $0x130] sm:$0xff]
          %v2461 = vld [vmem:[#allocation2 + $0x138] sm:$0xff]
          %v2462 = vld [vmem:[#allocation2 + $0x140] sm:$0xff]
          %v2463 = vld [vmem:[#allocation2 + $0x148] sm:$0xff]
          %v2464 = vld [vmem:[#allocation2 + $0x150] sm:$0xff]
          %v2465 = vld [vmem:[#allocation2 + $0x158] sm:$0xff]
          %v2466 = vld [vmem:[#allocation2 + $0x160] sm:$0xff]
          %v2467 = vld [vmem:[#allocation2 + $0x168] sm:$0xff]
          %v2468 = vld [vmem:[#allocation2 + $0x170] sm:$0xff]
          %v2469 = vld [vmem:[#allocation2 + $0x178] sm:$0xff]
          %v2470 = vmul.f32 %v2422, 2.0
          %v2471 = vmul.f32 %v2425, 2.0
          %v2472 = vmul.f32 %v2428, 2.0
          %v2473 = vmul.f32 %v2431, 2.0
          %v2474 = vmul.f32 %v2434, 2.0
          %v2475 = vmul.f32 %v2437, 2.0
          %v2476 = vmul.f32 %v2440, 2.0
          %v2477 = vmul.f32 %v2443, 2.0
          %v2478 = vmul.f32 %v2446, 2.0
          %v2479 = vmul.f32 %v2449, 2.0
          %v2480 = vmul.f32 %v2452, 2.0
          %v2481 = vmul.f32 %v2455, 2.0
          %v2482 = vmul.f32 %v2458, 2.0
          %v2483 = vmul.f32 %v2461, 2.0
          %v2484 = vmul.f32 %v2464, 2.0
          %v2485 = vmul.f32 %v2467, 2.0
          %v2486 = vpack.c.bf16 %v2471, %v2470
          %v2487 = vpack.c.bf16 %v2473, %v2472
          %v2488 = vpack.c.bf16 %v2475, %v2474
          %v2489 = vpack.c.bf16 %v2477, %v2476
          %v2490 = vpack.c.bf16 %v2479, %v2478
          %v2491 = vpack.c.bf16 %v2481, %v2480
          %v2492 = vpack.c.bf16 %v2483, %v2482
          %v2493 = vpack.c.bf16 %v2485, %v2484
          %v2494 = vld [vmem:[%s488] sm:$0xff]
          %v2495 = vld [vmem:[%s488 + $0x8] sm:$0xff]
          %v2498 = vunpack.c.l.b16 %v2494
          %v2499 = vunpack.c.h.b16 %v2494
          %v2500 = vunpack.c.l.b16 %v2495
          %v2501 = vunpack.c.h.b16 %v2495
          %v2502 = vpack.c.b16 %v2500, %v2498
          %v2503 = vpack.c.b16 %v2501, %v2499
          %v2507 = vsel %vm949, %v2486, 0
          %v2510 = vsel %vm949, %v2487, 0
          %v2513 = vsel %vm949, %v2488, 0
          %v2516 = vsel %vm949, %v2489, 0
          %v2519 = vsel %vm949, %v2490, 0
          %v2522 = vsel %vm949, %v2491, 0
          %v2525 = vsel %vm949, %v2492, 0
          %v2528 = vsel %vm949, %v2493, 0
          %2530 = vmatprep.subr.bf16.mxu0 %v2503
          %2531 = vmatpush1.bf16.msra.mxu0 %v2502
          %2532 = vmatprep.subr.bf16.mxu0 0
          %2533 = vmatpush1.bf16.msra.mxu0 0
          %2534 = vmatprep.subr.bf16.mxu0 0
          %2535 = vmatpush1.bf16.msra.mxu0 0
          %2536 = vmatprep.subr.bf16.mxu0 0
          %2537 = vmatpush1.bf16.msra.mxu0 0
          %2538 = vmatprep.subr.bf16.mxu0 0
          %2539 = vmatpush1.bf16.msra.mxu0 0
          %2540 = vmatprep.subr.bf16.mxu0 0
          %2541 = vmatpush1.bf16.msra.mxu0 0
          %2542 = vmatprep.subr.bf16.mxu0 0
          %2543 = vmatpush1.bf16.msra.mxu0 0
          %2544 = vmatprep.subr.bf16.mxu0 0
          %2545 = vmatpush1.bf16.msra.mxu0 0
          %2546 = vmatprep.subr.bf16.mxu0 0
          %2547 = vmatpush1.bf16.msra.mxu0 0
          %2548 = vmatprep.subr.bf16.mxu0 0
          %2549 = vmatpush1.bf16.msra.mxu0 0
          %2550 = vmatprep.subr.bf16.mxu0 0
          %2551 = vmatpush1.bf16.msra.mxu0 0
          %2552 = vmatprep.subr.bf16.mxu0 0
          %2553 = vmatpush1.bf16.msra.mxu0 0
          %2554 = vmatprep.subr.bf16.mxu0 0
          %2555 = vmatpush1.bf16.msra.mxu0 0
          %2556 = vmatprep.subr.bf16.mxu0 0
          %2557 = vmatpush1.bf16.msra.mxu0 0
          %2558 = vmatprep.subr.bf16.mxu0 0
          %2559 = vmatpush1.bf16.msra.mxu0 0
          %2560 = vmatprep.subr.bf16.mxu0 0
          %2561 = vmatpush1.bf16.msra.mxu0 0
          %2562 = vmatprep.mubr.bf16.mxu0 0
          %2563 = vmatmul.mubr.bf16.gmra.mrb[0].mxu0 %v2507
          %v2564 = vpop.f32.mrb[0].mxu0
          %v2565 = vadd.f32 0.0, %v2564
          %v2566 = vpop.f32.mrb[0].mxu0
          %v2567 = vadd.f32 0.0, %v2566
          %v2568 = vpop.f32.mrb[0].mxu0
          %v2569 = vadd.f32 0.0, %v2568
          %v2570 = vpop.f32.mrb[0].mxu0
          %v2571 = vadd.f32 0.0, %v2570
          %2572 = vmatprep.mubr.bf16.mxu0 0
          %2573 = vmatmul.mubr.bf16.gmra.mrb[0].mxu0 %v2510
          %v2574 = vpop.f32.mrb[0].mxu0
          %v2575 = vadd.f32 0.0, %v2574
          %v2576 = vpop.f32.mrb[0].mxu0
          %v2577 = vadd.f32 0.0, %v2576
          %v2578 = vpop.f32.mrb[0].mxu0
          %v2579 = vadd.f32 0.0, %v2578
          %v2580 = vpop.f32.mrb[0].mxu0
          %v2581 = vadd.f32 0.0, %v2580
          %2582 = vmatprep.mubr.bf16.mxu0 0
          %2583 = vmatmul.mubr.bf16.gmra.mrb[0].mxu0 %v2513
          %v2584 = vpop.f32.mrb[0].mxu0
          %v2585 = vadd.f32 0.0, %v2584
          %v2586 = vpop.f32.mrb[0].mxu0
          %v2587 = vadd.f32 0.0, %v2586
          %v2588 = vpop.f32.mrb[0].mxu0
          %v2589 = vadd.f32 0.0, %v2588
          %v2590 = vpop.f32.mrb[0].mxu0
          %v2591 = vadd.f32 0.0, %v2590
          %2592 = vmatprep.mubr.bf16.mxu0 0
          %2593 = vmatmul.mubr.bf16.gmra.mrb[0].mxu0 %v2516
          %v2594 = vpop.f32.mrb[0].mxu0
          %v2595 = vadd.f32 0.0, %v2594
          %v2596 = vpop.f32.mrb[0].mxu0
          %v2597 = vadd.f32 0.0, %v2596
          %v2598 = vpop.f32.mrb[0].mxu0
          %v2599 = vadd.f32 0.0, %v2598
          %v2600 = vpop.f32.mrb[0].mxu0
          %v2601 = vadd.f32 0.0, %v2600
          %2602 = vmatprep.mubr.bf16.mxu0 0
          %2603 = vmatmul.mubr.bf16.gmra.mrb[0].mxu0 %v2519
          %v2604 = vpop.f32.mrb[0].mxu0
          %v2605 = vadd.f32 0.0, %v2604
          %v2606 = vpop.f32.mrb[0].mxu0
          %v2607 = vadd.f32 0.0, %v2606
          %v2608 = vpop.f32.mrb[0].mxu0
          %v2609 = vadd.f32 0.0, %v2608
          %v2610 = vpop.f32.mrb[0].mxu0
          %v2611 = vadd.f32 0.0, %v2610
          %2612 = vmatprep.mubr.bf16.mxu0 0
          %2613 = vmatmul.mubr.bf16.gmra.mrb[0].mxu0 %v2522
          %v2614 = vpop.f32.mrb[0].mxu0
          %v2615 = vadd.f32 0.0, %v2614
          %v2616 = vpop.f32.mrb[0].mxu0
          %v2617 = vadd.f32 0.0, %v2616
          %v2618 = vpop.f32.mrb[0].mxu0
          %v2619 = vadd.f32 0.0, %v2618
          %v2620 = vpop.f32.mrb[0].mxu0
          %v2621 = vadd.f32 0.0, %v2620
          %2622 = vmatprep.mubr.bf16.mxu0 0
          %2623 = vmatmul.mubr.bf16.gmra.mrb[0].mxu0 %v2525
          %v2624 = vpop.f32.mrb[0].mxu0
          %v2625 = vadd.f32 0.0, %v2624
          %v2626 = vpop.f32.mrb[0].mxu0
          %v2627 = vadd.f32 0.0, %v2626
          %v2628 = vpop.f32.mrb[0].mxu0
          %v2629 = vadd.f32 0.0, %v2628
          %v2630 = vpop.f32.mrb[0].mxu0
          %v2631 = vadd.f32 0.0, %v2630
          %2632 = vmatprep.mubr.bf16.mxu0 0
          %2633 = vmatmul.mubr.bf16.gmra.mrb[0].mxu0 %v2528
          %v2634 = vpop.f32.mrb[0].mxu0
          %v2635 = vadd.f32 0.0, %v2634
          %v2636 = vpop.f32.mrb[0].mxu0
          %v2637 = vadd.f32 0.0, %v2636
          %v2638 = vpop.f32.mrb[0].mxu0
          %v2639 = vadd.f32 0.0, %v2638
          %v2640 = vpop.f32.mrb[0].mxu0
          %v2641 = vadd.f32 0.0, %v2640
          %2642 = vdwg.mxu0
          %v2643 = vadd.f32 %v2423, %v2565
          %v2644 = vadd.f32 %v2424, %v2567
          %v2645 = vadd.f32 %v2426, %v2569
          %v2646 = vadd.f32 %v2427, %v2571
          %v2647 = vadd.f32 %v2429, %v2575
          %v2648 = vadd.f32 %v2430, %v2577
          %v2649 = vadd.f32 %v2432, %v2579
          %v2650 = vadd.f32 %v2433, %v2581
          %v2651 = vadd.f32 %v2435, %v2585
          %v2652 = vadd.f32 %v2436, %v2587
          %v2653 = vadd.f32 %v2438, %v2589
          %v2654 = vadd.f32 %v2439, %v2591
          %v2655 = vadd.f32 %v2441, %v2595
          %v2656 = vadd.f32 %v2442, %v2597
          %v2657 = vadd.f32 %v2444, %v2599
          %v2658 = vadd.f32 %v2445, %v2601
          %v2659 = vadd.f32 %v2447, %v2605
          %v2660 = vadd.f32 %v2448, %v2607
          %v2661 = vadd.f32 %v2450, %v2609
          %v2662 = vadd.f32 %v2451, %v2611
          %v2663 = vadd.f32 %v2453, %v2615
          %v2664 = vadd.f32 %v2454, %v2617
          %v2665 = vadd.f32 %v2456, %v2619
          %v2666 = vadd.f32 %v2457, %v2621
          %v2667 = vadd.f32 %v2459, %v2625
          %v2668 = vadd.f32 %v2460, %v2627
          %v2669 = vadd.f32 %v2462, %v2629
          %v2670 = vadd.f32 %v2463, %v2631
          %v2671 = vadd.f32 %v2465, %v2635
          %v2672 = vadd.f32 %v2466, %v2637
          %v2673 = vadd.f32 %v2468, %v2639
          %v2674 = vadd.f32 %v2469, %v2641
          %v2675 = vpack.c.bf16 %v2645, %v2643
          %v2676 = vpack.c.bf16 %v2646, %v2644
          %v2677 = vpack.c.bf16 %v2649, %v2647
          %v2678 = vpack.c.bf16 %v2650, %v2648
          %v2679 = vpack.c.bf16 %v2653, %v2651
          %v2680 = vpack.c.bf16 %v2654, %v2652
          %v2681 = vpack.c.bf16 %v2657, %v2655
          %v2682 = vpack.c.bf16 %v2658, %v2656
          %v2683 = vpack.c.bf16 %v2661, %v2659
          %v2684 = vpack.c.bf16 %v2662, %v2660
          %v2685 = vpack.c.bf16 %v2665, %v2663
          %v2686 = vpack.c.bf16 %v2666, %v2664
          %v2687 = vpack.c.bf16 %v2669, %v2667
          %v2688 = vpack.c.bf16 %v2670, %v2668
          %v2689 = vpack.c.bf16 %v2673, %v2671
          %v2690 = vpack.c.bf16 %v2674, %v2672
          %v2707 = vunpack.c.l.b16 %v2675
          %v2708 = vunpack.c.l.b16 %v2676
          %v2709 = vunpack.c.h.b16 %v2675
          %v2710 = vunpack.c.h.b16 %v2676
          %v2711 = vunpack.c.l.b16 %v2677
          %v2712 = vunpack.c.l.b16 %v2678
          %v2713 = vunpack.c.h.b16 %v2677
          %v2714 = vunpack.c.h.b16 %v2678
          %v2715 = vunpack.c.l.b16 %v2679
          %v2716 = vunpack.c.l.b16 %v2680
          %v2717 = vunpack.c.h.b16 %v2679
          %v2718 = vunpack.c.h.b16 %v2680
          %v2719 = vunpack.c.l.b16 %v2681
          %v2720 = vunpack.c.l.b16 %v2682
          %v2721 = vunpack.c.h.b16 %v2681
          %v2722 = vunpack.c.h.b16 %v2682
          %v2723 = vunpack.c.l.b16 %v2683
          %v2724 = vunpack.c.l.b16 %v2684
          %v2725 = vunpack.c.h.b16 %v2683
          %v2726 = vunpack.c.h.b16 %v2684
          %v2727 = vunpack.c.l.b16 %v2685
          %v2728 = vunpack.c.l.b16 %v2686
          %v2729 = vunpack.c.h.b16 %v2685
          %v2730 = vunpack.c.h.b16 %v2686
          %v2731 = vunpack.c.l.b16 %v2687
          %v2732 = vunpack.c.l.b16 %v2688
          %v2733 = vunpack.c.h.b16 %v2687
          %v2734 = vunpack.c.h.b16 %v2688
          %v2735 = vunpack.c.l.b16 %v2689
          %v2736 = vunpack.c.l.b16 %v2690
          %v2737 = vunpack.c.h.b16 %v2689
          %v2738 = vunpack.c.h.b16 %v2690
          %v2739 = vpack.c.b16 %v2708, %v2707
          %v2740 = vpack.c.b16 %v2710, %v2709
          %v2741 = vpack.c.b16 %v2712, %v2711
          %v2742 = vpack.c.b16 %v2714, %v2713
          %v2743 = vpack.c.b16 %v2716, %v2715
          %v2744 = vpack.c.b16 %v2718, %v2717
          %v2745 = vpack.c.b16 %v2720, %v2719
          %v2746 = vpack.c.b16 %v2722, %v2721
          %v2747 = vpack.c.b16 %v2724, %v2723
          %v2748 = vpack.c.b16 %v2726, %v2725
          %v2749 = vpack.c.b16 %v2728, %v2727
          %v2750 = vpack.c.b16 %v2730, %v2729
          %v2751 = vpack.c.b16 %v2732, %v2731
          %v2752 = vpack.c.b16 %v2734, %v2733
          %v2753 = vpack.c.b16 %v2736, %v2735
          %v2754 = vpack.c.b16 %v2738, %v2737
          %2771 = vst [vmem:[%s474] sm:$0xff] %v2739
          %2772 = vst [vmem:[%s474 + $0x8] sm:$0xff] %v2740
          %2773 = vst [vmem:[%s474 + $0x10] sm:$0xff] %v2741
          %2774 = vst [vmem:[%s474 + $0x18] sm:$0xff] %v2742
          %2775 = vst [vmem:[%s474 + $0x20] sm:$0xff] %v2743
          %2776 = vst [vmem:[%s474 + $0x28] sm:$0xff] %v2744
          %2777 = vst [vmem:[%s474 + $0x30] sm:$0xff] %v2745
          %2778 = vst [vmem:[%s474 + $0x38] sm:$0xff] %v2746
          %2779 = vst [vmem:[%s474 + $0x40] sm:$0xff] %v2747
          %2780 = vst [vmem:[%s474 + $0x48] sm:$0xff] %v2748
          %2781 = vst [vmem:[%s474 + $0x50] sm:$0xff] %v2749
          %2782 = vst [vmem:[%s474 + $0x58] sm:$0xff] %v2750
          %2783 = vst [vmem:[%s474 + $0x60] sm:$0xff] %v2751
          %2784 = vst [vmem:[%s474 + $0x68] sm:$0xff] %v2752
          %2785 = vst [vmem:[%s474 + $0x70] sm:$0xff] %v2753
          %2786 = vst [vmem:[%s474 + $0x78] sm:$0xff] %v2754
        $region102: #{tpu_custom_call.1} parent=77 // pred_fallthru
          _
        %s2787 = sand.u32 %s219, 1
        %s2788 = scalar_lea.sflag [#allocation6], %s2787
        %s2789 = sand.u32 %s219, 1
        %s2790 = smul.addr %s2789, 128
        %s2791 = scalar_lea.vmem [#allocation11], %s2790
        // Predicated region
        $region103: #{tpu_custom_call.1} parent=77 // pred_check
          %p2792 = pneg %p229
        $region104: #{tpu_custom_call.1} parent=77 // pred_check_branch
          %2794 = sbr.rel (%p2792) target = $region106
        $region105: #{tpu_custom_call.1} parent=77 // pred_region
          %s2795 = smul.u32 16, %s32
          %s2797 = ssub.s32 2048, 2048
          %2798 = vsyncadd %s2788, %s2797
          %s2799 = smul.addr %s2795, 2
          %s2800 = smul.addr %s31, 64
          %s2801 = sadd.s32 %s2799, %s2800
          %s2802 = smul.addr %s2801, 64
          %s2803 = scalar_lea.hbm %s6, %s2802
          %s2804 = sshll.u32 %s2791, 4
          %s2805 = int_to_ptr.vmem [resolvable:$true] %s2804
          %2810 = dma.vmem_to_hbm [thread:$0]  %s2805, 2048, %s2803, %s2788, 128, 128, 8
        $region106: #{tpu_custom_call.1} parent=77 // pred_fallthru
          _
      $region78: #{tpu_custom_call.1} parent=5 // pred_fallthru
        _
      %p2811 = scmp.le.s32.totalorder 2, %s21
      // Predicated region
      $region107: #{tpu_custom_call.1} parent=5 // pred_check
        %p2812 = pneg %p2811
      $region108: #{tpu_custom_call.1} parent=5 // pred_check_branch
        %2814 = sbr.rel (%p2812) target = $region110
      $region109: #{tpu_custom_call.1} parent=5 // pred_region
        %s2815 = ssub.s32 %s21, 2
        // Predicated region
        $region111: #{tpu_custom_call.1} parent=109 // pred_check
          %p2816 = pneg %p235
        $region112: #{tpu_custom_call.1} parent=109 // pred_check_branch
          %2818 = sbr.rel (%p2816) target = $region114
        $region113: #{tpu_custom_call.1} parent=109 // pred_region
          %s2819 = sand.u32 %s220, 1
          %s2820 = scalar_lea.sflag [#allocation6], %s2819
          %s2821 = sand.u32 %s220, 1
          %s2822 = smul.addr %s2821, 128
          %s2823 = scalar_lea.vmem [#allocation11], %s2822
          %2824 = dma.done %s2820, 2048
        $region114: #{tpu_custom_call.1} parent=109 // pred_fallthru
          _
      $region110: #{tpu_custom_call.1} parent=5 // pred_fallthru
        _
    $region6: #{tpu_custom_call.1} parent=1 // loop_footer
      %s25 = sadd.s32 1, %s21
    $region7: #{tpu_custom_call.1} parent=1 // loop_footer_branch
      %20 = sbr.rel target = $region3
    $region8: #{tpu_custom_call.1} parent=1 // loop_exit
      _
    %2825 = vsyncpa [#allocation5], 1
    %s2826 = scalar_lea.sflag [#allocation5], 1
    %2827 = vsyncpa %s2826, 1
    %2828 = vsyncpa [#allocation8], 1
    %s2829 = scalar_lea.sflag [#allocation8], 1
    %2830 = vsyncpa %s2829, 1
    %2831 = vsyncpa [#allocation6], 1
    %s2832 = scalar_lea.sflag [#allocation6], 1
    %2833 = vsyncpa %s2832, 1

</llo_original>
